<compile_context>
chip_gen: v7x
topology: tpu7x:2x2x1
jax: 0.10.0
libtpu: 0.0.40
codegen_flags: <defaults>
</compile_context>

<pallas_src>
import math

import jax
import jax.numpy as jnp
import numpy as np
from jax.experimental import pallas as pl
from jax.experimental.pallas import tpu as pltpu

# ---------------- config (small but TPU-tile-friendly shapes) ----------------
SEQ = 256                      # tokens
HIDDEN = 256                   # config.hidden_size
N_INNER = 4 * HIDDEN           # config.n_inner default = 4 * hidden_size
TM = 128                       # token rows per grid step (fills the MXU M dim)
TN = 512                       # n_inner columns per grid step (fc2 reduction chunk)

_GELU_A = math.sqrt(2.0 / math.pi)
_GELU_B = _GELU_A * 0.044715


# ------------------------------- Pallas kernel -------------------------------
def phi_mlp_kernel(x_ref, w1_ref, b1_ref, w2_ref, b2_ref, out_ref, acc_ref):
    j = pl.program_id(1)

    @pl.when(j == 0)
    def _():
        acc_ref[...] = jnp.zeros_like(acc_ref)

    # fc1 chunk: [TM, H] bf16 @ [H, TN] bf16 -> f32 accumulation on the MXU.
    h = jnp.dot(x_ref[...], w1_ref[...], preferred_element_type=jnp.float32)
    h = h + b1_ref[...]                                       # [TM, TN] f32

    # gelu_new (tanh approximation, matches HF NewGELUActivation), f32 math:
    # poly is 2 muls + 1 add, tanh runs on the EUP slot (overlaps MXU).
    inner = h * (_GELU_A + _GELU_B * h * h)
    h = 0.5 * h * (1.0 + jnp.tanh(inner))

    # fc2 partial sum: [TM, TN] bf16 @ [TN, H] bf16 -> f32 VMEM accumulator.
    acc_ref[...] += jnp.dot(h.astype(w2_ref.dtype), w2_ref[...],
                            preferred_element_type=jnp.float32)

    @pl.when(j == pl.num_programs(1) - 1)
    def _():
        out_ref[...] = (acc_ref[...] + b2_ref[...]).astype(out_ref.dtype)


# --------------------------------- wrapper -----------------------------------
def phi_mlp(x, params, *, tm=TM, tn=TN):
    S, H = x.shape
    n_inner = params["w1"].shape[1]

    # (8,128) BlockSpec alignment requirements.
    assert S % tm == 0, "token count must be a multiple of the token tile"
    assert H % 128 == 0, "hidden_size must be a multiple of 128"
    assert tn % 128 == 0 and n_inner % tn == 0, "n_inner tile must divide n_inner and be 128-aligned"

    # bf16 on the MXU / DMA path, f32 biases + accumulation.
    x_bf16 = x.astype(jnp.bfloat16)
    w1 = params["w1"].astype(jnp.bfloat16)
    w2 = params["w2"].astype(jnp.bfloat16)
    b1 = params["b1"].astype(jnp.float32)
    b2 = params["b2"].astype(jnp.float32)

    grid = (S // tm, n_inner // tn)

    cost = pl.CostEstimate(
        flops=4 * S * H * n_inner,                # 2 matmuls, 2*S*H*n_inner each
        transcendentals=S * n_inner,              # one tanh per fc1 output
        bytes_accessed=(x_bf16.size * 2 + w1.size * 2 + b1.size * 4
                        + w2.size * 2 + b2.size * 4 + S * H * 4),
    )

    return pl.pallas_call(
        phi_mlp_kernel,
        out_shape=jax.ShapeDtypeStruct((S, H), jnp.float32),
        grid_spec=pltpu.PrefetchScalarGridSpec(
            num_scalar_prefetch=0,
            grid=grid,
            in_specs=[
                pl.BlockSpec((tm, H), lambda i, j: (i, 0)),    # x: per-token block
                pl.BlockSpec((H, tn), lambda i, j: (0, j)),    # W1: streamed over j
                pl.BlockSpec((1, tn), lambda i, j: (0, j)),    # b1: streamed over j
                pl.BlockSpec((tn, H), lambda i, j: (j, 0)),    # W2: streamed over j
                pl.BlockSpec((1, H), lambda i, j: (0, 0)),     # b2: invariant
            ],
            out_specs=pl.BlockSpec((tm, H), lambda i, j: (i, 0)),
            scratch_shapes=[pltpu.VMEM((tm, H), jnp.float32)],  # fc2 accumulator
        ),
        compiler_params=pltpu.CompilerParams(
            dimension_semantics=("parallel", "arbitrary"),
            vmem_limit_bytes=32 * 1024 * 1024,
        ),
        cost_estimate=cost,
    )(x_bf16, w1, b1, w2, b2)


# ------------------------------ pure-JAX reference ---------------------------
def phi_mlp_ref(x, params):
    # Mirror the bf16 rounding of the MXU inputs; accumulate in f32.
    xf = x.astype(jnp.bfloat16).astype(jnp.float32)
    w1 = params["w1"].astype(jnp.bfloat16).astype(jnp.float32)
    w2 = params["w2"].astype(jnp.bfloat16).astype(jnp.float32)
    h = jnp.dot(xf, w1, precision=jax.lax.Precision.HIGHEST) + params["b1"]
    h = 0.5 * h * (1.0 + jnp.tanh(_GELU_A * (h + 0.044715 * h ** 3)))
    out = jnp.dot(h, w2, precision=jax.lax.Precision.HIGHEST)
    return out + params["b2"]


# ----------------------------------- main ------------------------------------
if __name__ == "__main__":
    key = jax.random.PRNGKey(0)
    ks = jax.random.split(key, 5)
    scale = 0.05

    params = {
        "w1": scale * jax.random.normal(ks[0], (HIDDEN, N_INNER), jnp.float32),
        "b1": scale * jax.random.normal(ks[1], (1, N_INNER), jnp.float32),
        "w2": scale * jax.random.normal(ks[2], (N_INNER, HIDDEN), jnp.float32),
        "b2": scale * jax.random.normal(ks[3], (1, HIDDEN), jnp.float32),
    }
    x = jax.random.normal(ks[4], (SEQ, HIDDEN), jnp.float32)

    out = jax.block_until_ready(phi_mlp(x, params))
    ref = jax.block_until_ready(phi_mlp_ref(x, params))

    # bf16 MXU inputs + bf16 intermediate h: loosen tolerance vs the f32 reference.
    np.testing.assert_allclose(np.asarray(out), np.asarray(ref),
                               rtol=2e-2, atol=2e-2)
    print("KERNEL_OK")
</pallas_src>

<mosaic_0001>
module attributes {stable_mosaic.version = 11 : i64} {
  func.func @phi_mlp_kernel(%arg0: i32, %arg1: i32, %arg2: memref<128x256xbf16, #tpu.memory_space<vmem>>, %arg3: memref<256x512xbf16, #tpu.memory_space<vmem>>, %arg4: memref<1x512xf32, #tpu.memory_space<vmem>>, %arg5: memref<512x256xbf16, #tpu.memory_space<vmem>>, %arg6: memref<1x256xf32, #tpu.memory_space<vmem>>, %arg7: memref<128x256xf32, #tpu.memory_space<vmem>>, %arg8: memref<128x256xf32, #tpu.memory_space<vmem>>) attributes {dimension_semantics = [#tpu.dimension_semantics<parallel>, #tpu.dimension_semantics<arbitrary>], iteration_bounds = array<i64: 2, 2>, scalar_prefetch = 0 : i64, scratch_operands = 1 : i64, tpu.core_type = #tpu.core_type<tc>, window_params = [{transform_indices = @transform_0, window_bounds = array<i64: 128, 256>}, {transform_indices = @transform_1, window_bounds = array<i64: 256, 512>}, {transform_indices = @transform_2, window_bounds = array<i64: 1, 512>}, {transform_indices = @transform_3, window_bounds = array<i64: 512, 256>}, {pipeline_mode = #tpu.pipeline_mode<synchronous>, transform_indices = @transform_4, window_bounds = array<i64: 1, 256>}, {transform_indices = @transform_5, window_bounds = array<i64: 128, 256>}]} {
    %c0_i32 = arith.constant 0 : i32
    %0 = arith.cmpi eq, %arg1, %c0_i32 : i32
    %1 = arith.extui %0 : i1 to i32
    %c0_i32_0 = arith.constant 0 : i32
    %2 = arith.cmpi ne, %1, %c0_i32_0 : i32
    scf.if %2 {
      %cst_18 = arith.constant 0.000000e+00 : f32
      %30 = vector.broadcast %cst_18 : f32 to vector<128x256xf32>
      %c0_19 = arith.constant 0 : index
      %c0_20 = arith.constant 0 : index
      %31 = vector.load %arg8[%c0_19, %c0_20] : memref<128x256xf32, #tpu.memory_space<vmem>>, vector<128x256xf32>
      tpu.vector_store %arg8[%c0_19, %c0_20], %30 {strides = array<i32>} : memref<128x256xf32, #tpu.memory_space<vmem>>, vector<128x256xf32>,
    } else {
    }
    %c0 = arith.constant 0 : index
    %c0_1 = arith.constant 0 : index
    %3 = vector.load %arg2[%c0, %c0_1] : memref<128x256xbf16, #tpu.memory_space<vmem>>, vector<128x256xbf16>
    %c0_2 = arith.constant 0 : index
    %c0_3 = arith.constant 0 : index
    %4 = vector.load %arg3[%c0_2, %c0_3] : memref<256x512xbf16, #tpu.memory_space<vmem>>, vector<256x512xbf16>
    %cst = arith.constant dense<0.000000e+00> : vector<128x512xf32>
    %5 = tpu.matmul %3, %4, %cst {dimension_numbers = #tpu.dot_dimension_numbers<[1], [0], [0], [1], [0, 0, 1, 1], [], []>} : vector<128x256xbf16>, vector<256x512xbf16>, vector<128x512xf32> -> vector<128x512xf32>
    %c0_4 = arith.constant 0 : index
    %c0_5 = arith.constant 0 : index
    %6 = vector.load %arg4[%c0_4, %c0_5] : memref<1x512xf32, #tpu.memory_space<vmem>>, vector<1x512xf32>
    %7 = vector.broadcast %6 : vector<1x512xf32> to vector<128x512xf32>
    %8 = arith.addf %5, %7 : vector<128x512xf32>
    %cst_6 = arith.constant 0.0356774069 : f32
    %9 = vector.broadcast %cst_6 : f32 to vector<128x512xf32>
    %10 = arith.mulf %9, %8 : vector<128x512xf32>
    %11 = arith.mulf %10, %8 : vector<128x512xf32>
    %cst_7 = arith.constant 0.797884583 : f32
    %12 = vector.broadcast %cst_7 : f32 to vector<128x512xf32>
    %13 = arith.addf %12, %11 : vector<128x512xf32>
    %14 = arith.mulf %8, %13 : vector<128x512xf32>
    %cst_8 = arith.constant 5.000000e-01 : f32
    %15 = vector.broadcast %cst_8 : f32 to vector<128x512xf32>
    %16 = arith.mulf %15, %8 : vector<128x512xf32>
    %17 = math.tanh %14 : vector<128x512xf32>
    %cst_9 = arith.constant 1.000000e+00 : f32
    %18 = vector.broadcast %cst_9 : f32 to vector<128x512xf32>
    %19 = arith.addf %18, %17 : vector<128x512xf32>
    %20 = arith.mulf %16, %19 : vector<128x512xf32>
    %c0_10 = arith.constant 0 : index
    %c0_11 = arith.constant 0 : index
    %21 = vector.load %arg8[%c0_10, %c0_11] : memref<128x256xf32, #tpu.memory_space<vmem>>, vector<128x256xf32>
    %22 = arith.truncf %20 : vector<128x512xf32> to vector<128x512xbf16>
    %c0_12 = arith.constant 0 : index
    %c0_13 = arith.constant 0 : index
    %23 = vector.load %arg5[%c0_12, %c0_13] : memref<512x256xbf16, #tpu.memory_space<vmem>>, vector<512x256xbf16>
    %cst_14 = arith.constant dense<0.000000e+00> : vector<128x256xf32>
    %24 = tpu.matmul %22, %23, %cst_14 {dimension_numbers = #tpu.dot_dimension_numbers<[1], [0], [0], [1], [0, 0, 1, 1], [], []>} : vector<128x512xbf16>, vector<512x256xbf16>, vector<128x256xf32> -> vector<128x256xf32>
    %25 = arith.addf %21, %24 : vector<128x256xf32>
    %c0_15 = arith.constant 0 : index
    %c0_16 = arith.constant 0 : index
    %26 = vector.load %arg8[%c0_15, %c0_16] : memref<128x256xf32, #tpu.memory_space<vmem>>, vector<128x256xf32>
    tpu.vector_store %arg8[%c0_15, %c0_16], %25 {strides = array<i32>} : memref<128x256xf32, #tpu.memory_space<vmem>>, vector<128x256xf32>,
    %c1_i32 = arith.constant 1 : i32
    %27 = arith.cmpi eq, %arg1, %c1_i32 : i32
    %28 = arith.extui %27 : i1 to i32
    %c0_i32_17 = arith.constant 0 : i32
    %29 = arith.cmpi ne, %28, %c0_i32_17 : i32
    scf.if %29 {
      %c0_18 = arith.constant 0 : index
      %c0_19 = arith.constant 0 : index
      %30 = vector.load %arg8[%c0_18, %c0_19] : memref<128x256xf32, #tpu.memory_space<vmem>>, vector<128x256xf32>
      %c0_20 = arith.constant 0 : index
      %c0_21 = arith.constant 0 : index
      %31 = vector.load %arg6[%c0_20, %c0_21] : memref<1x256xf32, #tpu.memory_space<vmem>>, vector<1x256xf32>
      %32 = vector.broadcast %31 : vector<1x256xf32> to vector<128x256xf32>
      %33 = arith.addf %30, %32 : vector<128x256xf32>
      %c0_22 = arith.constant 0 : index
      %c0_23 = arith.constant 0 : index
      %34 = vector.load %arg7[%c0_22, %c0_23] : memref<128x256xf32, #tpu.memory_space<vmem>>, vector<128x256xf32>
      tpu.vector_store %arg7[%c0_22, %c0_23], %33 {strides = array<i32>} : memref<128x256xf32, #tpu.memory_space<vmem>>, vector<128x256xf32>,
    } else {
    }
    return
  }
  func.func @transform_0(%arg0: i32, %arg1: i32) -> (i32, i32) {
    %c0_i32 = arith.constant 0 : i32
    %c0_i32_0 = arith.constant 0 : i32
    return %arg0, %c0_i32 : i32, i32
  }
  func.func @transform_1(%arg0: i32, %arg1: i32) -> (i32, i32) {
    %c0_i32 = arith.constant 0 : i32
    %c0_i32_0 = arith.constant 0 : i32
    return %c0_i32, %arg1 : i32, i32
  }
  func.func @transform_2(%arg0: i32, %arg1: i32) -> (i32, i32) {
    %c0_i32 = arith.constant 0 : i32
    %c0_i32_0 = arith.constant 0 : i32
    return %c0_i32, %arg1 : i32, i32
  }
  func.func @transform_3(%arg0: i32, %arg1: i32) -> (i32, i32) {
    %c0_i32 = arith.constant 0 : i32
    %c0_i32_0 = arith.constant 0 : i32
    return %arg1, %c0_i32 : i32, i32
  }
  func.func @transform_4(%arg0: i32, %arg1: i32) -> (i32, i32) {
    %c0_i32 = arith.constant 0 : i32
    %c0_i32_0 = arith.constant 0 : i32
    %c0_i32_1 = arith.constant 0 : i32
    return %c0_i32, %c0_i32_0 : i32, i32
  }
  func.func @transform_5(%arg0: i32, %arg1: i32) -> (i32, i32) {
    %c0_i32 = arith.constant 0 : i32
    %c0_i32_0 = arith.constant 0 : i32
    return %arg0, %c0_i32 : i32, i32
  }
}

</mosaic_0001>

<llo_original>
// kernel: tpu_custom_call.1
$region0: #{tpu_custom_call.1}
  #allocation0 [shape = 'u32[]', space=smem, size = 0x4, offset = 0x4, fixed_abs, tag = 'smem constant byte address 0x4 - core index']
  #allocation1 [shape = 'u32[144,128]{1,0:T(1,128)}', space=vmem, size = 0x12000, scoped, tag = 'internal scratch']
  #allocation2 [shape = 'f32[128,256]{1,0:T(8,128)}', space=vmem, size = 0x20000, scoped, tag = 'scratch operand']
  %s0 = inlined_call_operand.hbm [shape: bf16[256,256], index: 0, kind: input, shape index: {}]
  %s1 = inlined_call_operand.hbm [shape: bf16[256,1024], index: 1, kind: input, shape index: {}]
  %s2 = inlined_call_operand.hbm [shape: f32[1,1024], index: 2, kind: input, shape index: {}]
  %s3 = inlined_call_operand.hbm [shape: bf16[1024,256], index: 3, kind: input, shape index: {}]
  %s4 = inlined_call_operand.vmem [shape: f32[1,256], index: 4, kind: input, shape index: {}]
  %s5 = inlined_call_operand.hbm [shape: f32[256,256], index: 5, kind: output, shape index: {}]
  %s6 = sld [smem:[#allocation0]]
  $region77: #{tpu_custom_call.1} parent=0
    _
  %s8 = ssub.s32 1, %s6
  %s9 = scalar_select 0, %s8, %s6
  $region1: #{tpu_custom_call.1} parent=0
    #allocation3 [shape = 'u8[131072]{0}', space=vmem, size = 0x20000, scoped, tag = 'input window, operand 0']
    #allocation4 [shape = 's32[2]{0}', space=sflag, size = 0x8, scoped, tag = 'scoped memory for tpu_custom_call.1']
    #allocation5 [shape = 's32[2]{0}', space=sflag, size = 0x8, scoped, tag = 'scoped memory for tpu_custom_call.1']
    #allocation6 [shape = 'u8[524288]{0}', space=vmem, size = 0x80000, scoped, tag = 'input window, operand 1']
    #allocation7 [shape = 's32[2]{0}', space=sflag, size = 0x8, scoped, tag = 'scoped memory for tpu_custom_call.1']
    #allocation8 [shape = 'u8[4096]{0}', space=vmem, size = 0x1000, scoped, tag = 'input window, operand 2']
    #allocation9 [shape = 'u8[524288]{0}', space=vmem, size = 0x80000, scoped, tag = 'input window, operand 3']
    #allocation10 [shape = 's32[2]{0}', space=sflag, size = 0x8, scoped, tag = 'scoped memory for tpu_custom_call.1']
    #allocation11 [shape = 'u8[262144]{0}', space=vmem, size = 0x40000, scoped, tag = 'output window, operand 0']
    %10 = vsyncpa [#allocation4], 0
    %s11 = scalar_lea.sflag [#allocation4], 1
    %12 = vsyncpa %s11, 0
    %13 = vsyncpa [#allocation7], 0
    %s14 = scalar_lea.sflag [#allocation7], 1
    %15 = vsyncpa %s14, 0
    %16 = vsyncpa [#allocation10], 0
    %s17 = scalar_lea.sflag [#allocation10], 1
    %18 = vsyncpa %s17, 0
    %19 = vsyncpa [#allocation5], 0
    %s20 = scalar_lea.sflag [#allocation5], 1
    %21 = vsyncpa %s20, 0
    loop: start=0, step=1, limit=6
    $region2: #{tpu_custom_call.1} parent=1 // loop_pre_header
      _
    $region3: #{tpu_custom_call.1} parent=1 // loop_header
      %s23 = sphi 0, %s27
      %p24 = scmp.ge.s32.totalorder %s23, 6
      %s30 = sphi 0, %s42
      %s31 = sphi 0, %s38
      %s32 = sphi 0, %s30
      %s33 = sphi 0, %s31
      %s34 = sphi 0, %s32
      %s35 = sphi 0, %s33
      %s45 = sphi 0, %s47
      %s48 = sphi 0, %s45
      %s49 = sphi 0, %s48
      %s65 = sphi 0, %s49
      %s71 = sphi 0, %s73
      %s74 = sphi 0, %s71
      %s75 = sphi 0, %s74
      %s91 = sphi 0, %s75
      %s97 = sphi 0, %s99
      %s100 = sphi 0, %s97
      %s101 = sphi 0, %s100
      %s117 = sphi 0, %s101
      %s123 = sphi 0, %s125
      %s126 = sphi 0, %s123
      %s127 = sphi 0, %s126
      %s143 = sphi 0, %s127
      %s147 = sphi 0, %s147
      %s149 = sphi 0, %s147
      %s150 = sphi 0, %s149
      %s164 = sphi 0, %s150
      %s170 = sphi 0, %s172
      %s173 = sphi 0, %s170
      %s174 = sphi 0, %s173
      %s190 = sphi 0, %s174
    $region4: #{tpu_custom_call.1} parent=1 // loop_header_branch
      %26 = sbr.rel (%p24) target = $region8
    $region5: #{tpu_custom_call.1} parent=1 // loop_body
      %s28 = ssub.s32 %s23, 1
      %s29 = ssub.s32 %s23, 2
      %s36 = sadd.s32 1, %s31
      %p37 = scmp.ge.s32.totalorder %s36, 2
      %s38 = scalar_select %p37, 0, %s36
      %s39 = sadd.s32 1, %s30
      %s40 = scalar_select %p37, %s39, %s30
      %p41 = scmp.ge.s32.totalorder %s40, 2
      %s42 = scalar_select %p41, 0, %s40
      %s43 = ssub.s32 %s30, %s42
      %p44 = scmp.eq.s32.totalorder %s43, 0
      %s46 = sadd.s32 %s45, 1
      %s47 = scalar_select %p44, %s45, %s46
      %p50 = pneg %p44
      %p51 = scmp.eq.s32.totalorder %s23, 3
      %p52 = por %p50, %p51
      %p53 = scmp.ne.s32.totalorder %s45, %s48
      %p54 = scmp.eq.s32.totalorder %s23, 0
      %p55 = por %p53, %p54
      %p56 = scmp.ne.s32.totalorder %s45, %s48
      %p57 = scmp.eq.s32.totalorder %s28, 3
      %p58 = por %p56, %p57
      %p59 = scmp.ne.s32.totalorder %s48, %s49
      %p60 = scmp.eq.s32.totalorder %s28, 0
      %p61 = por %p59, %p60
      %p62 = scmp.ne.s32.totalorder %s48, %s49
      %p63 = scmp.eq.s32.totalorder %s29, 3
      %p64 = por %p62, %p63
      %p66 = scmp.ne.s32.totalorder %s49, %s65
      %p67 = scmp.eq.s32.totalorder %s29, 0
      %p68 = por %p66, %p67
      %s69 = ssub.s32 %s31, %s38
      %p70 = scmp.eq.s32.totalorder %s69, 0
      %s72 = sadd.s32 %s71, 1
      %s73 = scalar_select %p70, %s71, %s72
      %p76 = pneg %p70
      %p77 = scmp.eq.s32.totalorder %s23, 3
      %p78 = por %p76, %p77
      %p79 = scmp.ne.s32.totalorder %s71, %s74
      %p80 = scmp.eq.s32.totalorder %s23, 0
      %p81 = por %p79, %p80
      %p82 = scmp.ne.s32.totalorder %s71, %s74
      %p83 = scmp.eq.s32.totalorder %s28, 3
      %p84 = por %p82, %p83
      %p85 = scmp.ne.s32.totalorder %s74, %s75
      %p86 = scmp.eq.s32.totalorder %s28, 0
      %p87 = por %p85, %p86
      %p88 = scmp.ne.s32.totalorder %s74, %s75
      %p89 = scmp.eq.s32.totalorder %s29, 3
      %p90 = por %p88, %p89
      %p92 = scmp.ne.s32.totalorder %s75, %s91
      %p93 = scmp.eq.s32.totalorder %s29, 0
      %p94 = por %p92, %p93
      %s95 = ssub.s32 %s31, %s38
      %p96 = scmp.eq.s32.totalorder %s95, 0
      %s98 = sadd.s32 %s97, 1
      %s99 = scalar_select %p96, %s97, %s98
      %p102 = pneg %p96
      %p103 = scmp.eq.s32.totalorder %s23, 3
      %p104 = por %p102, %p103
      %p105 = scmp.ne.s32.totalorder %s97, %s100
      %p106 = scmp.eq.s32.totalorder %s23, 0
      %p107 = por %p105, %p106
      %p108 = scmp.ne.s32.totalorder %s97, %s100
      %p109 = scmp.eq.s32.totalorder %s28, 3
      %p110 = por %p108, %p109
      %p111 = scmp.ne.s32.totalorder %s100, %s101
      %p112 = scmp.eq.s32.totalorder %s28, 0
      %p113 = por %p111, %p112
      %p114 = scmp.ne.s32.totalorder %s100, %s101
      %p115 = scmp.eq.s32.totalorder %s29, 3
      %p116 = por %p114, %p115
      %p118 = scmp.ne.s32.totalorder %s101, %s117
      %p119 = scmp.eq.s32.totalorder %s29, 0
      %p120 = por %p118, %p119
      %s121 = ssub.s32 %s31, %s38
      %p122 = scmp.eq.s32.totalorder %s121, 0
      %s124 = sadd.s32 %s123, 1
      %s125 = scalar_select %p122, %s123, %s124
      %p128 = pneg %p122
      %p129 = scmp.eq.s32.totalorder %s23, 3
      %p130 = por %p128, %p129
      %p131 = scmp.ne.s32.totalorder %s123, %s126
      %p132 = scmp.eq.s32.totalorder %s23, 0
      %p133 = por %p131, %p132
      %p134 = scmp.ne.s32.totalorder %s123, %s126
      %p135 = scmp.eq.s32.totalorder %s28, 3
      %p136 = por %p134, %p135
      %p137 = scmp.ne.s32.totalorder %s126, %s127
      %p138 = scmp.eq.s32.totalorder %s28, 0
      %p139 = por %p137, %p138
      %p140 = scmp.ne.s32.totalorder %s126, %s127
      %p141 = scmp.eq.s32.totalorder %s29, 3
      %p142 = por %p140, %p141
      %p144 = scmp.ne.s32.totalorder %s127, %s143
      %p145 = scmp.eq.s32.totalorder %s29, 0
      %p146 = por %p144, %p145
      %s148 = sadd.s32 %s147, 1
      %p151 = scmp.eq.s32.totalorder %s23, 3
      %p152 = scmp.ne.s32.totalorder %s147, %s149
      %p153 = scmp.eq.s32.totalorder %s23, 0
      %p154 = por %p152, %p153
      %p155 = scmp.ne.s32.totalorder %s147, %s149
      %p156 = scmp.eq.s32.totalorder %s28, 3
      %p157 = por %p155, %p156
      %p158 = scmp.ne.s32.totalorder %s149, %s150
      %p159 = scmp.eq.s32.totalorder %s28, 0
      %p160 = por %p158, %p159
      %p161 = scmp.ne.s32.totalorder %s149, %s150
      %p162 = scmp.eq.s32.totalorder %s29, 3
      %p163 = por %p161, %p162
      %p165 = scmp.ne.s32.totalorder %s150, %s164
      %p166 = scmp.eq.s32.totalorder %s29, 0
      %p167 = por %p165, %p166
      %s168 = ssub.s32 %s30, %s42
      %p169 = scmp.eq.s32.totalorder %s168, 0
      %s171 = sadd.s32 %s170, 1
      %s172 = scalar_select %p169, %s170, %s171
      %p175 = pneg %p169
      %p176 = scmp.eq.s32.totalorder %s23, 3
      %p177 = por %p175, %p176
      %p178 = scmp.ne.s32.totalorder %s170, %s173
      %p179 = scmp.eq.s32.totalorder %s23, 0
      %p180 = por %p178, %p179
      %p181 = scmp.ne.s32.totalorder %s170, %s173
      %p182 = scmp.eq.s32.totalorder %s28, 3
      %p183 = por %p181, %p182
      %p184 = scmp.ne.s32.totalorder %s173, %s174
      %p185 = scmp.eq.s32.totalorder %s28, 0
      %p186 = por %p184, %p185
      %p187 = scmp.ne.s32.totalorder %s173, %s174
      %p188 = scmp.eq.s32.totalorder %s29, 3
      %p189 = por %p187, %p188
      %p191 = scmp.ne.s32.totalorder %s174, %s190
      %p192 = scmp.eq.s32.totalorder %s29, 0
      %p193 = por %p191, %p192
      %p194 = scmp.le.s32.totalorder 1, %s23
      %p195 = scmp.lt.s32.totalorder %s23, 5
      %p196 = pnand %p194, %p195
      %p197 = pneg %p196
      // Predicated region
      $region9: #{tpu_custom_call.1} parent=5 // pred_check
        _
      $region10: #{tpu_custom_call.1} parent=5 // pred_check_branch
        %199 = sbr.rel (%p196) target = $region12
      $region11: #{tpu_custom_call.1} parent=5 // pred_region
        %s200 = ssub.s32 %s23, 1
        // Predicated region
        $region13: #{tpu_custom_call.1} parent=11 // pred_check
          %p201 = pneg %p160
        $region14: #{tpu_custom_call.1} parent=11 // pred_check_branch
          %203 = sbr.rel (%p201) target = $region16
        $region15: #{tpu_custom_call.1} parent=11 // pred_region
          _
        $region16: #{tpu_custom_call.1} parent=11 // pred_fallthru
          _
      $region12: #{tpu_custom_call.1} parent=5 // pred_fallthru
        _
      %p204 = scmp.lt.s32.totalorder %s23, 4
      // Predicated region
      $region17: #{tpu_custom_call.1} parent=5 // pred_check
        %p205 = pneg %p204
      $region18: #{tpu_custom_call.1} parent=5 // pred_check_branch
        %207 = sbr.rel (%p205) target = $region20
      $region19: #{tpu_custom_call.1} parent=5 // pred_region
        // Predicated region
        $region21: #{tpu_custom_call.1} parent=19 // pred_check
          %p208 = pneg %p55
        $region22: #{tpu_custom_call.1} parent=19 // pred_check_branch
          %210 = sbr.rel (%p208) target = $region24
        $region23: #{tpu_custom_call.1} parent=19 // pred_region
          %s211 = sand.u32 %s45, 1
          %s212 = scalar_lea.sflag [#allocation4], %s211
          %s213 = sand.u32 %s45, 1
          %s214 = smul.addr %s213, 128
          %s215 = scalar_lea.vmem [#allocation3], %s214
          %s216 = smul.u32 16, %s30
          %s218 = ssub.s32 2048, 2048
          %219 = vsyncadd %s212, %s218
          %s220 = smul.addr %s216, 2
          %s221 = smul.addr %s220, 64
          %s222 = scalar_lea.hbm %s0, %s221
          %s223 = sshll.u32 %s215, 4
          %s224 = int_to_ptr.vmem [resolvable:$true] %s223
          %229 = dma.hbm_to_vmem [thread:$0]  %s222, 2048, %s224, %s212, 128, 128, 8
        $region24: #{tpu_custom_call.1} parent=19 // pred_fallthru
          _
        // Predicated region
        $region25: #{tpu_custom_call.1} parent=19 // pred_check
          %p230 = pneg %p81
        $region26: #{tpu_custom_call.1} parent=19 // pred_check_branch
          %232 = sbr.rel (%p230) target = $region28
        $region27: #{tpu_custom_call.1} parent=19 // pred_region
          %s233 = sand.u32 %s23, 1
          %s234 = scalar_lea.sflag [#allocation7], %s233
          %s235 = sand.u32 %s71, 1
          %s236 = smul.addr %s235, 512
          %s237 = scalar_lea.vmem [#allocation6], %s236
          %s238 = smul.u32 4, %s31
          %s240 = ssub.s32 8192, 8192
          %241 = vsyncadd %s234, %s240
          %s242 = smul.addr %s238, 64
          %s243 = scalar_lea.hbm %s1, %s242
          %s244 = sshll.u32 %s237, 4
          %s245 = int_to_ptr.vmem [resolvable:$true] %s244
          %250 = dma.hbm_to_vmem [thread:$0]  %s243, 8192, %s245, %s234, 512, 256, 16
        $region28: #{tpu_custom_call.1} parent=19 // pred_fallthru
          _
        // Predicated region
        $region29: #{tpu_custom_call.1} parent=19 // pred_check
          %p251 = pneg %p107
        $region30: #{tpu_custom_call.1} parent=19 // pred_check_branch
          %253 = sbr.rel (%p251) target = $region32
        $region31: #{tpu_custom_call.1} parent=19 // pred_region
          %s254 = sand.u32 %s23, 1
          %s255 = scalar_lea.sflag [#allocation7], %s254
          %s256 = sand.u32 %s97, 1
          %s257 = smul.addr %s256, 4
          %s258 = scalar_lea.vmem [#allocation8], %s257
          %s259 = smul.u32 4, %s31
          %s261 = ssub.s32 64, 64
          %262 = vsyncadd %s255, %s261
          %s263 = smul.addr %s259, 16
          %s264 = scalar_lea.hbm %s2, %s263
          %s266 = sshll.u32 %s258, 4
          %s267 = int_to_ptr.vmem [resolvable:$true] %s266
          %269 = dma.hbm_to_vmem [thread:$0]  %s264, 64, %s267, %s255
        $region32: #{tpu_custom_call.1} parent=19 // pred_fallthru
          _
        // Predicated region
        $region33: #{tpu_custom_call.1} parent=19 // pred_check
          %p270 = pneg %p133
        $region34: #{tpu_custom_call.1} parent=19 // pred_check_branch
          %272 = sbr.rel (%p270) target = $region36
        $region35: #{tpu_custom_call.1} parent=19 // pred_region
          %s273 = sand.u32 %s123, 1
          %s274 = scalar_lea.sflag [#allocation10], %s273
          %s275 = sand.u32 %s123, 1
          %s276 = smul.addr %s275, 512
          %s277 = scalar_lea.vmem [#allocation9], %s276
          %s278 = smul.u32 64, %s31
          %s280 = ssub.s32 8192, 8192
          %281 = vsyncadd %s274, %s280
          %s282 = smul.addr %s278, 2
          %s283 = smul.addr %s282, 64
          %s284 = scalar_lea.hbm %s3, %s283
          %s285 = sshll.u32 %s277, 4
          %s286 = int_to_ptr.vmem [resolvable:$true] %s285
          %291 = dma.hbm_to_vmem [thread:$0]  %s284, 8192, %s286, %s274, 128, 128, 8
        $region36: #{tpu_custom_call.1} parent=19 // pred_fallthru
          _
      $region20: #{tpu_custom_call.1} parent=5 // pred_fallthru
        _
      %p292 = scmp.le.s32.totalorder 1, %s23
      %p293 = scmp.lt.s32.totalorder %s23, 5
      %p294 = pnand %p292, %p293
      %p295 = pneg %p294
      // Predicated region
      $region37: #{tpu_custom_call.1} parent=5 // pred_check
        _
      $region38: #{tpu_custom_call.1} parent=5 // pred_check_branch
        %297 = sbr.rel (%p294) target = $region40
      $region39: #{tpu_custom_call.1} parent=5 // pred_region
        %s298 = ssub.s32 %s23, 1
        %s299 = sand.u32 %s48, 1
        %s300 = scalar_lea.sflag [#allocation4], %s299
        %s301 = sand.u32 %s48, 1
        %s302 = smul.addr %s301, 128
        %s303 = scalar_lea.vmem [#allocation3], %s302
        // Predicated region
        $region41: #{tpu_custom_call.1} parent=39 // pred_check
          %p304 = pneg %p61
        $region42: #{tpu_custom_call.1} parent=39 // pred_check_branch
          %306 = sbr.rel (%p304) target = $region44
        $region43: #{tpu_custom_call.1} parent=39 // pred_region
          %307 = dma.done %s300, 2048
        $region44: #{tpu_custom_call.1} parent=39 // pred_fallthru
          _
        %s308 = sand.u32 %s28, 1
        %s309 = scalar_lea.sflag [#allocation7], %s308
        %s310 = sand.u32 %s74, 1
        %s311 = smul.addr %s310, 512
        %s312 = scalar_lea.vmem [#allocation6], %s311
        // Predicated region
        $region45: #{tpu_custom_call.1} parent=39 // pred_check
          %p313 = pneg %p87
        $region46: #{tpu_custom_call.1} parent=39 // pred_check_branch
          %315 = sbr.rel (%p313) target = $region48
        $region47: #{tpu_custom_call.1} parent=39 // pred_region
          %316 = dma.done %s309, 8192
        $region48: #{tpu_custom_call.1} parent=39 // pred_fallthru
          _
        %s317 = sand.u32 %s28, 1
        %s318 = scalar_lea.sflag [#allocation7], %s317
        %s319 = sand.u32 %s100, 1
        %s320 = smul.addr %s319, 4
        %s321 = scalar_lea.vmem [#allocation8], %s320
        // Predicated region
        $region49: #{tpu_custom_call.1} parent=39 // pred_check
          %p322 = pneg %p113
        $region50: #{tpu_custom_call.1} parent=39 // pred_check_branch
          %324 = sbr.rel (%p322) target = $region52
        $region51: #{tpu_custom_call.1} parent=39 // pred_region
          %325 = dma.done %s318, 64
        $region52: #{tpu_custom_call.1} parent=39 // pred_fallthru
          _
        %s326 = sand.u32 %s126, 1
        %s327 = scalar_lea.sflag [#allocation10], %s326
        %s328 = sand.u32 %s126, 1
        %s329 = smul.addr %s328, 512
        %s330 = scalar_lea.vmem [#allocation9], %s329
        // Predicated region
        $region53: #{tpu_custom_call.1} parent=39 // pred_check
          %p331 = pneg %p139
        $region54: #{tpu_custom_call.1} parent=39 // pred_check_branch
          %333 = sbr.rel (%p331) target = $region56
        $region55: #{tpu_custom_call.1} parent=39 // pred_region
          %334 = dma.done %s327, 8192
        $region56: #{tpu_custom_call.1} parent=39 // pred_fallthru
          _
        %s335 = sand.u32 %s48, 1
        %s336 = scalar_lea.sflag [#allocation4], %s335
        %s337 = sand.u32 %s48, 1
        %s338 = smul.addr %s337, 128
        %s339 = scalar_lea.vmem [#allocation3], %s338
        %p340 = pneg %p61
        %p341 = pneg %p58
        %s342 = sand.u32 %s28, 1
        %s343 = scalar_lea.sflag [#allocation7], %s342
        %s344 = sand.u32 %s74, 1
        %s345 = smul.addr %s344, 512
        %s346 = scalar_lea.vmem [#allocation6], %s345
        %p347 = pneg %p87
        %p348 = pneg %p84
        %s349 = sand.u32 %s28, 1
        %s350 = scalar_lea.sflag [#allocation7], %s349
        %s351 = sand.u32 %s100, 1
        %s352 = smul.addr %s351, 4
        %s353 = scalar_lea.vmem [#allocation8], %s352
        %p354 = pneg %p113
        %p355 = pneg %p110
        %s356 = sand.u32 %s126, 1
        %s357 = scalar_lea.sflag [#allocation10], %s356
        %s358 = sand.u32 %s126, 1
        %s359 = smul.addr %s358, 512
        %s360 = scalar_lea.vmem [#allocation9], %s359
        %p361 = pneg %p139
        %p362 = pneg %p136
        %p363 = pneg %p160
        %p364 = pneg %p157
        %p365 = pneg %p186
        %p366 = pneg %p183
        %s367 = sand.u32 %s173, 1
        %s368 = scalar_lea.sflag [#allocation5], %s367
        %s369 = sand.u32 %s173, 1
        %s370 = smul.addr %s369, 256
        %s371 = scalar_lea.vmem [#allocation11], %s370
        %s372 = smul.u32 16, %s32
        %s373 = smul.u32 4, %s33
        %s374 = smul.u32 4, %s33
        %s375 = smul.u32 64, %s33
        %s376 = smul.u32 16, %s32
        %p377 = scmp.eq.s32.totalorder %s33, 0
        // Predicated region
        $region57: #{tpu_custom_call.1} parent=39 // pred_check
          %p378 = pneg %p377
        $region58: #{tpu_custom_call.1} parent=39 // pred_check_branch
          %380 = sbr.rel (%p378) target = $region60
        $region59: #{tpu_custom_call.1} parent=39 // pred_region
          %381 = vst [vmem:[#allocation2] sm:$0xff] 0.0
          %382 = vst [vmem:[#allocation2 + $0x8] sm:$0xff] 0.0
          %383 = vst [vmem:[#allocation2 + $0x10] sm:$0xff] 0.0
          %384 = vst [vmem:[#allocation2 + $0x18] sm:$0xff] 0.0
          %385 = vst [vmem:[#allocation2 + $0x20] sm:$0xff] 0.0
          %386 = vst [vmem:[#allocation2 + $0x28] sm:$0xff] 0.0
          %387 = vst [vmem:[#allocation2 + $0x30] sm:$0xff] 0.0
          %388 = vst [vmem:[#allocation2 + $0x38] sm:$0xff] 0.0
          %389 = vst [vmem:[#allocation2 + $0x40] sm:$0xff] 0.0
          %390 = vst [vmem:[#allocation2 + $0x48] sm:$0xff] 0.0
          %391 = vst [vmem:[#allocation2 + $0x50] sm:$0xff] 0.0
          %392 = vst [vmem:[#allocation2 + $0x58] sm:$0xff] 0.0
          %393 = vst [vmem:[#allocation2 + $0x60] sm:$0xff] 0.0
          %394 = vst [vmem:[#allocation2 + $0x68] sm:$0xff] 0.0
          %395 = vst [vmem:[#allocation2 + $0x70] sm:$0xff] 0.0
          %396 = vst [vmem:[#allocation2 + $0x78] sm:$0xff] 0.0
          %397 = vst [vmem:[#allocation2 + $0x80] sm:$0xff] 0.0
          %398 = vst [vmem:[#allocation2 + $0x88] sm:$0xff] 0.0
          %399 = vst [vmem:[#allocation2 + $0x90] sm:$0xff] 0.0
          %400 = vst [vmem:[#allocation2 + $0x98] sm:$0xff] 0.0
          %401 = vst [vmem:[#allocation2 + $0xa0] sm:$0xff] 0.0
          %402 = vst [vmem:[#allocation2 + $0xa8] sm:$0xff] 0.0
          %403 = vst [vmem:[#allocation2 + $0xb0] sm:$0xff] 0.0
          %404 = vst [vmem:[#allocation2 + $0xb8] sm:$0xff] 0.0
          %405 = vst [vmem:[#allocation2 + $0xc0] sm:$0xff] 0.0
          %406 = vst [vmem:[#allocation2 + $0xc8] sm:$0xff] 0.0
          %407 = vst [vmem:[#allocation2 + $0xd0] sm:$0xff] 0.0
          %408 = vst [vmem:[#allocation2 + $0xd8] sm:$0xff] 0.0
          %409 = vst [vmem:[#allocation2 + $0xe0] sm:$0xff] 0.0
          %410 = vst [vmem:[#allocation2 + $0xe8] sm:$0xff] 0.0
          %411 = vst [vmem:[#allocation2 + $0xf0] sm:$0xff] 0.0
          %412 = vst [vmem:[#allocation2 + $0xf8] sm:$0xff] 0.0
        $region60: #{tpu_custom_call.1} parent=39 // pred_fallthru
          _
        %v413 = vld [vmem:[%s303] sm:$0xff]
        %v414 = vld [vmem:[%s303 + $0x8] sm:$0xff]
        %v415 = vld [vmem:[%s303 + $0x10] sm:$0xff]
        %v416 = vld [vmem:[%s303 + $0x18] sm:$0xff]
        %v417 = vld [vmem:[%s303 + $0x20] sm:$0xff]
        %v418 = vld [vmem:[%s303 + $0x28] sm:$0xff]
        %v419 = vld [vmem:[%s303 + $0x30] sm:$0xff]
        %v420 = vld [vmem:[%s303 + $0x38] sm:$0xff]
        %v421 = vld [vmem:[%s303 + $0x40] sm:$0xff]
        %v422 = vld [vmem:[%s303 + $0x48] sm:$0xff]
        %v423 = vld [vmem:[%s303 + $0x50] sm:$0xff]
        %v424 = vld [vmem:[%s303 + $0x58] sm:$0xff]
        %v425 = vld [vmem:[%s303 + $0x60] sm:$0xff]
        %v426 = vld [vmem:[%s303 + $0x68] sm:$0xff]
        %v427 = vld [vmem:[%s303 + $0x70] sm:$0xff]
        %v428 = vld [vmem:[%s303 + $0x78] sm:$0xff]
        %v429 = vld [vmem:[%s312] sm:$0xff]
        %v430 = vld [vmem:[%s312 + $0x8] sm:$0xff]
        %v431 = vld [vmem:[%s312 + $0x10] sm:$0xff]
        %v432 = vld [vmem:[%s312 + $0x18] sm:$0xff]
        %v433 = vld [vmem:[%s312 + $0x20] sm:$0xff]
        %v434 = vld [vmem:[%s312 + $0x28] sm:$0xff]
        %v435 = vld [vmem:[%s312 + $0x30] sm:$0xff]
        %v436 = vld [vmem:[%s312 + $0x38] sm:$0xff]
        %v437 = vld [vmem:[%s312 + $0x40] sm:$0xff]
        %v438 = vld [vmem:[%s312 + $0x48] sm:$0xff]
        %v439 = vld [vmem:[%s312 + $0x50] sm:$0xff]
        %v440 = vld [vmem:[%s312 + $0x58] sm:$0xff]
        %v441 = vld [vmem:[%s312 + $0x60] sm:$0xff]
        %v442 = vld [vmem:[%s312 + $0x68] sm:$0xff]
        %v443 = vld [vmem:[%s312 + $0x70] sm:$0xff]
        %v444 = vld [vmem:[%s312 + $0x78] sm:$0xff]
        %v445 = vld [vmem:[%s312 + $0x80] sm:$0xff]
        %v446 = vld [vmem:[%s312 + $0x88] sm:$0xff]
        %v447 = vld [vmem:[%s312 + $0x90] sm:$0xff]
        %v448 = vld [vmem:[%s312 + $0x98] sm:$0xff]
        %v449 = vld [vmem:[%s312 + $0xa0] sm:$0xff]
        %v450 = vld [vmem:[%s312 + $0xa8] sm:$0xff]
        %v451 = vld [vmem:[%s312 + $0xb0] sm:$0xff]
        %v452 = vld [vmem:[%s312 + $0xb8] sm:$0xff]
        %v453 = vld [vmem:[%s312 + $0xc0] sm:$0xff]
        %v454 = vld [vmem:[%s312 + $0xc8] sm:$0xff]
        %v455 = vld [vmem:[%s312 + $0xd0] sm:$0xff]
        %v456 = vld [vmem:[%s312 + $0xd8] sm:$0xff]
        %v457 = vld [vmem:[%s312 + $0xe0] sm:$0xff]
        %v458 = vld [vmem:[%s312 + $0xe8] sm:$0xff]
        %v459 = vld [vmem:[%s312 + $0xf0] sm:$0xff]
        %v460 = vld [vmem:[%s312 + $0xf8] sm:$0xff]
        %v461 = vld [vmem:[%s312 + $0x100] sm:$0xff]
        %v462 = vld [vmem:[%s312 + $0x108] sm:$0xff]
        %v463 = vld [vmem:[%s312 + $0x110] sm:$0xff]
        %v464 = vld [vmem:[%s312 + $0x118] sm:$0xff]
        %v465 = vld [vmem:[%s312 + $0x120] sm:$0xff]
        %v466 = vld [vmem:[%s312 + $0x128] sm:$0xff]
        %v467 = vld [vmem:[%s312 + $0x130] sm:$0xff]
        %v468 = vld [vmem:[%s312 + $0x138] sm:$0xff]
        %v469 = vld [vmem:[%s312 + $0x140] sm:$0xff]
        %v470 = vld [vmem:[%s312 + $0x148] sm:$0xff]
        %v471 = vld [vmem:[%s312 + $0x150] sm:$0xff]
        %v472 = vld [vmem:[%s312 + $0x158] sm:$0xff]
        %v473 = vld [vmem:[%s312 + $0x160] sm:$0xff]
        %v474 = vld [vmem:[%s312 + $0x168] sm:$0xff]
        %v475 = vld [vmem:[%s312 + $0x170] sm:$0xff]
        %v476 = vld [vmem:[%s312 + $0x178] sm:$0xff]
        %v477 = vld [vmem:[%s312 + $0x180] sm:$0xff]
        %v478 = vld [vmem:[%s312 + $0x188] sm:$0xff]
        %v479 = vld [vmem:[%s312 + $0x190] sm:$0xff]
        %v480 = vld [vmem:[%s312 + $0x198] sm:$0xff]
        %v481 = vld [vmem:[%s312 + $0x1a0] sm:$0xff]
        %v482 = vld [vmem:[%s312 + $0x1a8] sm:$0xff]
        %v483 = vld [vmem:[%s312 + $0x1b0] sm:$0xff]
        %v484 = vld [vmem:[%s312 + $0x1b8] sm:$0xff]
        %v485 = vld [vmem:[%s312 + $0x1c0] sm:$0xff]
        %v486 = vld [vmem:[%s312 + $0x1c8] sm:$0xff]
        %v487 = vld [vmem:[%s312 + $0x1d0] sm:$0xff]
        %v488 = vld [vmem:[%s312 + $0x1d8] sm:$0xff]
        %v489 = vld [vmem:[%s312 + $0x1e0] sm:$0xff]
        %v490 = vld [vmem:[%s312 + $0x1e8] sm:$0xff]
        %v491 = vld [vmem:[%s312 + $0x1f0] sm:$0xff]
        %v492 = vld [vmem:[%s312 + $0x1f8] sm:$0xff]
        %v493 = vld [vmem:[%s321] sm:$0xf]
        %v495 = vlaneseq
        %v496 = vshrl.u32 %v495, 7
        %v497 = vsub.s32 0, %v496
        %v498 = vrot.slane %v493, %v497
        %v499 = vlaneseq
        %v500 = vshrl.u32 %v499, 7
        %v501 = vsub.s32 1, %v500
        %v502 = vrot.slane %v493, %v501
        %v503 = vlaneseq
        %v504 = vshrl.u32 %v503, 7
        %v505 = vsub.s32 2, %v504
        %v506 = vrot.slane %v493, %v505
        %v507 = vlaneseq
        %v508 = vshrl.u32 %v507, 7
        %v509 = vsub.s32 3, %v508
        %v510 = vrot.slane %v493, %v509
        %v531 = vunpack.c.l.b16 %v413
        %v532 = vunpack.c.h.b16 %v413
        %v533 = vunpack.c.l.b16 %v414
        %v534 = vunpack.c.h.b16 %v414
        %v535 = vunpack.c.l.b16 %v415
        %v536 = vunpack.c.h.b16 %v415
        %v537 = vunpack.c.l.b16 %v416
        %v538 = vunpack.c.h.b16 %v416
        %v539 = vunpack.c.l.b16 %v417
        %v540 = vunpack.c.h.b16 %v417
        %v541 = vunpack.c.l.b16 %v418
        %v542 = vunpack.c.h.b16 %v418
        %v543 = vunpack.c.l.b16 %v419
        %v544 = vunpack.c.h.b16 %v419
        %v545 = vunpack.c.l.b16 %v420
        %v546 = vunpack.c.h.b16 %v420
        %v547 = vunpack.c.l.b16 %v421
        %v548 = vunpack.c.h.b16 %v421
        %v549 = vunpack.c.l.b16 %v422
        %v550 = vunpack.c.h.b16 %v422
        %v551 = vunpack.c.l.b16 %v423
        %v552 = vunpack.c.h.b16 %v423
        %v553 = vunpack.c.l.b16 %v424
        %v554 = vunpack.c.h.b16 %v424
        %v555 = vunpack.c.l.b16 %v425
        %v556 = vunpack.c.h.b16 %v425
        %v557 = vunpack.c.l.b16 %v426
        %v558 = vunpack.c.h.b16 %v426
        %v559 = vunpack.c.l.b16 %v427
        %v560 = vunpack.c.h.b16 %v427
        %v561 = vunpack.c.l.b16 %v428
        %v562 = vunpack.c.h.b16 %v428
        %v563 = vpack.c.b16 %v533, %v531
        %v564 = vpack.c.b16 %v534, %v532
        %v565 = vpack.c.b16 %v537, %v535
        %v566 = vpack.c.b16 %v538, %v536
        %v567 = vpack.c.b16 %v541, %v539
        %v568 = vpack.c.b16 %v542, %v540
        %v569 = vpack.c.b16 %v545, %v543
        %v570 = vpack.c.b16 %v546, %v544
        %v571 = vpack.c.b16 %v549, %v547
        %v572 = vpack.c.b16 %v550, %v548
        %v573 = vpack.c.b16 %v553, %v551
        %v574 = vpack.c.b16 %v554, %v552
        %v575 = vpack.c.b16 %v557, %v555
        %v576 = vpack.c.b16 %v558, %v556
        %v577 = vpack.c.b16 %v561, %v559
        %v578 = vpack.c.b16 %v562, %v560
        %v659 = vunpack.c.l.b16 %v429
        %v660 = vunpack.c.h.b16 %v429
        %v661 = vunpack.c.l.b16 %v430
        %v662 = vunpack.c.h.b16 %v430
        %v663 = vunpack.c.l.b16 %v431
        %v664 = vunpack.c.h.b16 %v431
        %v665 = vunpack.c.l.b16 %v432
        %v666 = vunpack.c.h.b16 %v432
        %v667 = vunpack.c.l.b16 %v433
        %v668 = vunpack.c.h.b16 %v433
        %v669 = vunpack.c.l.b16 %v434
        %v670 = vunpack.c.h.b16 %v434
        %v671 = vunpack.c.l.b16 %v435
        %v672 = vunpack.c.h.b16 %v435
        %v673 = vunpack.c.l.b16 %v436
        %v674 = vunpack.c.h.b16 %v436
        %v675 = vunpack.c.l.b16 %v437
        %v676 = vunpack.c.h.b16 %v437
        %v677 = vunpack.c.l.b16 %v438
        %v678 = vunpack.c.h.b16 %v438
        %v679 = vunpack.c.l.b16 %v439
        %v680 = vunpack.c.h.b16 %v439
        %v681 = vunpack.c.l.b16 %v440
        %v682 = vunpack.c.h.b16 %v440
        %v683 = vunpack.c.l.b16 %v441
        %v684 = vunpack.c.h.b16 %v441
        %v685 = vunpack.c.l.b16 %v442
        %v686 = vunpack.c.h.b16 %v442
        %v687 = vunpack.c.l.b16 %v443
        %v688 = vunpack.c.h.b16 %v443
        %v689 = vunpack.c.l.b16 %v444
        %v690 = vunpack.c.h.b16 %v444
        %v691 = vunpack.c.l.b16 %v445
        %v692 = vunpack.c.h.b16 %v445
        %v693 = vunpack.c.l.b16 %v446
        %v694 = vunpack.c.h.b16 %v446
        %v695 = vunpack.c.l.b16 %v447
        %v696 = vunpack.c.h.b16 %v447
        %v697 = vunpack.c.l.b16 %v448
        %v698 = vunpack.c.h.b16 %v448
        %v699 = vunpack.c.l.b16 %v449
        %v700 = vunpack.c.h.b16 %v449
        %v701 = vunpack.c.l.b16 %v450
        %v702 = vunpack.c.h.b16 %v450
        %v703 = vunpack.c.l.b16 %v451
        %v704 = vunpack.c.h.b16 %v451
        %v705 = vunpack.c.l.b16 %v452
        %v706 = vunpack.c.h.b16 %v452
        %v707 = vunpack.c.l.b16 %v453
        %v708 = vunpack.c.h.b16 %v453
        %v709 = vunpack.c.l.b16 %v454
        %v710 = vunpack.c.h.b16 %v454
        %v711 = vunpack.c.l.b16 %v455
        %v712 = vunpack.c.h.b16 %v455
        %v713 = vunpack.c.l.b16 %v456
        %v714 = vunpack.c.h.b16 %v456
        %v715 = vunpack.c.l.b16 %v457
        %v716 = vunpack.c.h.b16 %v457
        %v717 = vunpack.c.l.b16 %v458
        %v718 = vunpack.c.h.b16 %v458
        %v719 = vunpack.c.l.b16 %v459
        %v720 = vunpack.c.h.b16 %v459
        %v721 = vunpack.c.l.b16 %v460
        %v722 = vunpack.c.h.b16 %v460
        %v723 = vunpack.c.l.b16 %v461
        %v724 = vunpack.c.h.b16 %v461
        %v725 = vunpack.c.l.b16 %v462
        %v726 = vunpack.c.h.b16 %v462
        %v727 = vunpack.c.l.b16 %v463
        %v728 = vunpack.c.h.b16 %v463
        %v729 = vunpack.c.l.b16 %v464
        %v730 = vunpack.c.h.b16 %v464
        %v731 = vunpack.c.l.b16 %v465
        %v732 = vunpack.c.h.b16 %v465
        %v733 = vunpack.c.l.b16 %v466
        %v734 = vunpack.c.h.b16 %v466
        %v735 = vunpack.c.l.b16 %v467
        %v736 = vunpack.c.h.b16 %v467
        %v737 = vunpack.c.l.b16 %v468
        %v738 = vunpack.c.h.b16 %v468
        %v739 = vunpack.c.l.b16 %v469
        %v740 = vunpack.c.h.b16 %v469
        %v741 = vunpack.c.l.b16 %v470
        %v742 = vunpack.c.h.b16 %v470
        %v743 = vunpack.c.l.b16 %v471
        %v744 = vunpack.c.h.b16 %v471
        %v745 = vunpack.c.l.b16 %v472
        %v746 = vunpack.c.h.b16 %v472
        %v747 = vunpack.c.l.b16 %v473
        %v748 = vunpack.c.h.b16 %v473
        %v749 = vunpack.c.l.b16 %v474
        %v750 = vunpack.c.h.b16 %v474
        %v751 = vunpack.c.l.b16 %v475
        %v752 = vunpack.c.h.b16 %v475
        %v753 = vunpack.c.l.b16 %v476
        %v754 = vunpack.c.h.b16 %v476
        %v755 = vunpack.c.l.b16 %v477
        %v756 = vunpack.c.h.b16 %v477
        %v757 = vunpack.c.l.b16 %v478
        %v758 = vunpack.c.h.b16 %v478
        %v759 = vunpack.c.l.b16 %v479
        %v760 = vunpack.c.h.b16 %v479
        %v761 = vunpack.c.l.b16 %v480
        %v762 = vunpack.c.h.b16 %v480
        %v763 = vunpack.c.l.b16 %v481
        %v764 = vunpack.c.h.b16 %v481
        %v765 = vunpack.c.l.b16 %v482
        %v766 = vunpack.c.h.b16 %v482
        %v767 = vunpack.c.l.b16 %v483
        %v768 = vunpack.c.h.b16 %v483
        %v769 = vunpack.c.l.b16 %v484
        %v770 = vunpack.c.h.b16 %v484
        %v771 = vunpack.c.l.b16 %v485
        %v772 = vunpack.c.h.b16 %v485
        %v773 = vunpack.c.l.b16 %v486
        %v774 = vunpack.c.h.b16 %v486
        %v775 = vunpack.c.l.b16 %v487
        %v776 = vunpack.c.h.b16 %v487
        %v777 = vunpack.c.l.b16 %v488
        %v778 = vunpack.c.h.b16 %v488
        %v779 = vunpack.c.l.b16 %v489
        %v780 = vunpack.c.h.b16 %v489
        %v781 = vunpack.c.l.b16 %v490
        %v782 = vunpack.c.h.b16 %v490
        %v783 = vunpack.c.l.b16 %v491
        %v784 = vunpack.c.h.b16 %v491
        %v785 = vunpack.c.l.b16 %v492
        %v786 = vunpack.c.h.b16 %v492
        %v787 = vpack.c.b16 %v663, %v659
        %v788 = vpack.c.b16 %v664, %v660
        %v789 = vpack.c.b16 %v665, %v661
        %v790 = vpack.c.b16 %v666, %v662
        %v791 = vpack.c.b16 %v671, %v667
        %v792 = vpack.c.b16 %v672, %v668
        %v793 = vpack.c.b16 %v673, %v669
        %v794 = vpack.c.b16 %v674, %v670
        %v795 = vpack.c.b16 %v679, %v675
        %v796 = vpack.c.b16 %v680, %v676
        %v797 = vpack.c.b16 %v681, %v677
        %v798 = vpack.c.b16 %v682, %v678
        %v799 = vpack.c.b16 %v687, %v683
        %v800 = vpack.c.b16 %v688, %v684
        %v801 = vpack.c.b16 %v689, %v685
        %v802 = vpack.c.b16 %v690, %v686
        %v803 = vpack.c.b16 %v695, %v691
        %v804 = vpack.c.b16 %v696, %v692
        %v805 = vpack.c.b16 %v697, %v693
        %v806 = vpack.c.b16 %v698, %v694
        %v807 = vpack.c.b16 %v703, %v699
        %v808 = vpack.c.b16 %v704, %v700
        %v809 = vpack.c.b16 %v705, %v701
        %v810 = vpack.c.b16 %v706, %v702
        %v811 = vpack.c.b16 %v711, %v707
        %v812 = vpack.c.b16 %v712, %v708
        %v813 = vpack.c.b16 %v713, %v709
        %v814 = vpack.c.b16 %v714, %v710
        %v815 = vpack.c.b16 %v719, %v715
        %v816 = vpack.c.b16 %v720, %v716
        %v817 = vpack.c.b16 %v721, %v717
        %v818 = vpack.c.b16 %v722, %v718
        %v819 = vpack.c.b16 %v727, %v723
        %v820 = vpack.c.b16 %v728, %v724
        %v821 = vpack.c.b16 %v729, %v725
        %v822 = vpack.c.b16 %v730, %v726
        %v823 = vpack.c.b16 %v735, %v731
        %v824 = vpack.c.b16 %v736, %v732
        %v825 = vpack.c.b16 %v737, %v733
        %v826 = vpack.c.b16 %v738, %v734
        %v827 = vpack.c.b16 %v743, %v739
        %v828 = vpack.c.b16 %v744, %v740
        %v829 = vpack.c.b16 %v745, %v741
        %v830 = vpack.c.b16 %v746, %v742
        %v831 = vpack.c.b16 %v751, %v747
        %v832 = vpack.c.b16 %v752, %v748
        %v833 = vpack.c.b16 %v753, %v749
        %v834 = vpack.c.b16 %v754, %v750
        %v835 = vpack.c.b16 %v759, %v755
        %v836 = vpack.c.b16 %v760, %v756
        %v837 = vpack.c.b16 %v761, %v757
        %v838 = vpack.c.b16 %v762, %v758
        %v839 = vpack.c.b16 %v767, %v763
        %v840 = vpack.c.b16 %v768, %v764
        %v841 = vpack.c.b16 %v769, %v765
        %v842 = vpack.c.b16 %v770, %v766
        %v843 = vpack.c.b16 %v775, %v771
        %v844 = vpack.c.b16 %v776, %v772
        %v845 = vpack.c.b16 %v777, %v773
        %v846 = vpack.c.b16 %v778, %v774
        %v847 = vpack.c.b16 %v783, %v779
        %v848 = vpack.c.b16 %v784, %v780
        %v849 = vpack.c.b16 %v785, %v781
        %v850 = vpack.c.b16 %v786, %v782
        %915 = vmatprep.subr.bf16.mxu0 %v788
        %916 = vmatpush1.bf16.msra.mxu0 %v787
        %917 = vmatprep.subr.bf16.mxu0 %v792
        %918 = vmatpush1.bf16.msra.mxu0 %v791
        %919 = vmatprep.subr.bf16.mxu0 %v796
        %920 = vmatpush1.bf16.msra.mxu0 %v795
        %921 = vmatprep.subr.bf16.mxu0 %v800
        %922 = vmatpush1.bf16.msra.mxu0 %v799
        %923 = vmatprep.subr.bf16.mxu0 %v804
        %924 = vmatpush1.bf16.msra.mxu0 %v803
        %925 = vmatprep.subr.bf16.mxu0 %v808
        %926 = vmatpush1.bf16.msra.mxu0 %v807
        %927 = vmatprep.subr.bf16.mxu0 %v812
        %928 = vmatpush1.bf16.msra.mxu0 %v811
        %929 = vmatprep.subr.bf16.mxu0 %v816
        %930 = vmatpush1.bf16.msra.mxu0 %v815
        %931 = vmatprep.subr.bf16.mxu0 %v820
        %932 = vmatpush1.bf16.msra.mxu0 %v819
        %933 = vmatprep.subr.bf16.mxu0 %v824
        %934 = vmatpush1.bf16.msra.mxu0 %v823
        %935 = vmatprep.subr.bf16.mxu0 %v828
        %936 = vmatpush1.bf16.msra.mxu0 %v827
        %937 = vmatprep.subr.bf16.mxu0 %v832
        %938 = vmatpush1.bf16.msra.mxu0 %v831
        %939 = vmatprep.subr.bf16.mxu0 %v836
        %940 = vmatpush1.bf16.msra.mxu0 %v835
        %941 = vmatprep.subr.bf16.mxu0 %v840
        %942 = vmatpush1.bf16.msra.mxu0 %v839
        %943 = vmatprep.subr.bf16.mxu0 %v844
        %944 = vmatpush1.bf16.msra.mxu0 %v843
        %945 = vmatprep.subr.bf16.mxu0 %v848
        %946 = vmatpush1.bf16.msra.mxu0 %v847
        %947 = vmatprep.mubr.bf16.mxu0 %v564
        %948 = vmatmul.mubr.bf16.gmra.mrb[0].mxu0 %v563
        %v949 = vpop.f32.mrb[0].mxu0
        %v950 = vadd.f32 %v498, %v949
        %v951 = vpop.f32.mrb[0].mxu0
        %v952 = vadd.f32 %v502, %v951
        %v953 = vpop.f32.mrb[0].mxu0
        %v954 = vadd.f32 %v498, %v953
        %v955 = vpop.f32.mrb[0].mxu0
        %v956 = vadd.f32 %v502, %v955
        %957 = vmatprep.mubr.bf16.mxu0 %v566
        %958 = vmatmul.mubr.bf16.gmra.mrb[0].mxu0 %v565
        %v959 = vpop.f32.mrb[0].mxu0
        %v960 = vadd.f32 %v498, %v959
        %v961 = vpop.f32.mrb[0].mxu0
        %v962 = vadd.f32 %v502, %v961
        %v963 = vpop.f32.mrb[0].mxu0
        %v964 = vadd.f32 %v498, %v963
        %v965 = vpop.f32.mrb[0].mxu0
        %v966 = vadd.f32 %v502, %v965
        %967 = vmatprep.mubr.bf16.mxu0 %v568
        %968 = vmatmul.mubr.bf16.gmra.mrb[0].mxu0 %v567
        %v969 = vpop.f32.mrb[0].mxu0
        %v970 = vadd.f32 %v498, %v969
        %v971 = vpop.f32.mrb[0].mxu0
        %v972 = vadd.f32 %v502, %v971
        %v973 = vpop.f32.mrb[0].mxu0
        %v974 = vadd.f32 %v498, %v973
        %v975 = vpop.f32.mrb[0].mxu0
        %v976 = vadd.f32 %v502, %v975
        %977 = vmatprep.mubr.bf16.mxu0 %v570
        %978 = vmatmul.mubr.bf16.gmra.mrb[0].mxu0 %v569
        %v979 = vpop.f32.mrb[0].mxu0
        %v980 = vadd.f32 %v498, %v979
        %v981 = vpop.f32.mrb[0].mxu0
        %v982 = vadd.f32 %v502, %v981
        %v983 = vpop.f32.mrb[0].mxu0
        %v984 = vadd.f32 %v498, %v983
        %v985 = vpop.f32.mrb[0].mxu0
        %v986 = vadd.f32 %v502, %v985
        %987 = vmatprep.mubr.bf16.mxu0 %v572
        %988 = vmatmul.mubr.bf16.gmra.mrb[0].mxu0 %v571
        %v989 = vpop.f32.mrb[0].mxu0
        %v990 = vadd.f32 %v498, %v989
        %v991 = vpop.f32.mrb[0].mxu0
        %v992 = vadd.f32 %v502, %v991
        %v993 = vpop.f32.mrb[0].mxu0
        %v994 = vadd.f32 %v498, %v993
        %v995 = vpop.f32.mrb[0].mxu0
        %v996 = vadd.f32 %v502, %v995
        %997 = vmatprep.mubr.bf16.mxu0 %v574
        %998 = vmatmul.mubr.bf16.gmra.mrb[0].mxu0 %v573
        %v999 = vpop.f32.mrb[0].mxu0
        %v1000 = vadd.f32 %v498, %v999
        %v1001 = vpop.f32.mrb[0].mxu0
        %v1002 = vadd.f32 %v502, %v1001
        %v1003 = vpop.f32.mrb[0].mxu0
        %v1004 = vadd.f32 %v498, %v1003
        %v1005 = vpop.f32.mrb[0].mxu0
        %v1006 = vadd.f32 %v502, %v1005
        %1007 = vmatprep.mubr.bf16.mxu0 %v576
        %1008 = vmatmul.mubr.bf16.gmra.mrb[0].mxu0 %v575
        %v1009 = vpop.f32.mrb[0].mxu0
        %v1010 = vadd.f32 %v498, %v1009
        %v1011 = vpop.f32.mrb[0].mxu0
        %v1012 = vadd.f32 %v502, %v1011
        %v1013 = vpop.f32.mrb[0].mxu0
        %v1014 = vadd.f32 %v498, %v1013
        %v1015 = vpop.f32.mrb[0].mxu0
        %v1016 = vadd.f32 %v502, %v1015
        %1017 = vmatprep.mubr.bf16.mxu0 %v578
        %1018 = vmatmul.mubr.bf16.gmra.mrb[0].mxu0 %v577
        %v1019 = vpop.f32.mrb[0].mxu0
        %v1020 = vadd.f32 %v498, %v1019
        %v1021 = vpop.f32.mrb[0].mxu0
        %v1022 = vadd.f32 %v502, %v1021
        %v1023 = vpop.f32.mrb[0].mxu0
        %v1024 = vadd.f32 %v498, %v1023
        %v1025 = vpop.f32.mrb[0].mxu0
        %v1026 = vadd.f32 %v502, %v1025
        %1027 = vdwg.mxu0
        %1028 = vmatprep.subr.bf16.mxu0 %v790
        %1029 = vmatpush1.bf16.msra.mxu0 %v789
        %1030 = vmatprep.subr.bf16.mxu0 %v794
        %1031 = vmatpush1.bf16.msra.mxu0 %v793
        %1032 = vmatprep.subr.bf16.mxu0 %v798
        %1033 = vmatpush1.bf16.msra.mxu0 %v797
        %1034 = vmatprep.subr.bf16.mxu0 %v802
        %1035 = vmatpush1.bf16.msra.mxu0 %v801
        %1036 = vmatprep.subr.bf16.mxu0 %v806
        %1037 = vmatpush1.bf16.msra.mxu0 %v805
        %1038 = vmatprep.subr.bf16.mxu0 %v810
        %1039 = vmatpush1.bf16.msra.mxu0 %v809
        %1040 = vmatprep.subr.bf16.mxu0 %v814
        %1041 = vmatpush1.bf16.msra.mxu0 %v813
        %1042 = vmatprep.subr.bf16.mxu0 %v818
        %1043 = vmatpush1.bf16.msra.mxu0 %v817
        %1044 = vmatprep.subr.bf16.mxu0 %v822
        %1045 = vmatpush1.bf16.msra.mxu0 %v821
        %1046 = vmatprep.subr.bf16.mxu0 %v826
        %1047 = vmatpush1.bf16.msra.mxu0 %v825
        %1048 = vmatprep.subr.bf16.mxu0 %v830
        %1049 = vmatpush1.bf16.msra.mxu0 %v829
        %1050 = vmatprep.subr.bf16.mxu0 %v834
        %1051 = vmatpush1.bf16.msra.mxu0 %v833
        %1052 = vmatprep.subr.bf16.mxu0 %v838
        %1053 = vmatpush1.bf16.msra.mxu0 %v837
        %1054 = vmatprep.subr.bf16.mxu0 %v842
        %1055 = vmatpush1.bf16.msra.mxu0 %v841
        %1056 = vmatprep.subr.bf16.mxu0 %v846
        %1057 = vmatpush1.bf16.msra.mxu0 %v845
        %1058 = vmatprep.subr.bf16.mxu0 %v850
        %1059 = vmatpush1.bf16.msra.mxu0 %v849
        %1060 = vmatprep.mubr.bf16.mxu0 %v564
        %1061 = vmatmul.mubr.bf16.gmra.mrb[0].mxu0 %v563
        %v1062 = vpop.f32.mrb[0].mxu0
        %v1063 = vadd.f32 %v506, %v1062
        %v1064 = vpop.f32.mrb[0].mxu0
        %v1065 = vadd.f32 %v510, %v1064
        %v1066 = vpop.f32.mrb[0].mxu0
        %v1067 = vadd.f32 %v506, %v1066
        %v1068 = vpop.f32.mrb[0].mxu0
        %v1069 = vadd.f32 %v510, %v1068
        %1070 = vmatprep.mubr.bf16.mxu0 %v566
        %1071 = vmatmul.mubr.bf16.gmra.mrb[0].mxu0 %v565
        %v1072 = vpop.f32.mrb[0].mxu0
        %v1073 = vadd.f32 %v506, %v1072
        %v1074 = vpop.f32.mrb[0].mxu0
        %v1075 = vadd.f32 %v510, %v1074
        %v1076 = vpop.f32.mrb[0].mxu0
        %v1077 = vadd.f32 %v506, %v1076
        %v1078 = vpop.f32.mrb[0].mxu0
        %v1079 = vadd.f32 %v510, %v1078
        %1080 = vmatprep.mubr.bf16.mxu0 %v568
        %1081 = vmatmul.mubr.bf16.gmra.mrb[0].mxu0 %v567
        %v1082 = vpop.f32.mrb[0].mxu0
        %v1083 = vadd.f32 %v506, %v1082
        %v1084 = vpop.f32.mrb[0].mxu0
        %v1085 = vadd.f32 %v510, %v1084
        %v1086 = vpop.f32.mrb[0].mxu0
        %v1087 = vadd.f32 %v506, %v1086
        %v1088 = vpop.f32.mrb[0].mxu0
        %v1089 = vadd.f32 %v510, %v1088
        %1090 = vmatprep.mubr.bf16.mxu0 %v570
        %1091 = vmatmul.mubr.bf16.gmra.mrb[0].mxu0 %v569
        %v1092 = vpop.f32.mrb[0].mxu0
        %v1093 = vadd.f32 %v506, %v1092
        %v1094 = vpop.f32.mrb[0].mxu0
        %v1095 = vadd.f32 %v510, %v1094
        %v1096 = vpop.f32.mrb[0].mxu0
        %v1097 = vadd.f32 %v506, %v1096
        %v1098 = vpop.f32.mrb[0].mxu0
        %v1099 = vadd.f32 %v510, %v1098
        %1100 = vmatprep.mubr.bf16.mxu0 %v572
        %1101 = vmatmul.mubr.bf16.gmra.mrb[0].mxu0 %v571
        %v1102 = vpop.f32.mrb[0].mxu0
        %v1103 = vadd.f32 %v506, %v1102
        %v1104 = vpop.f32.mrb[0].mxu0
        %v1105 = vadd.f32 %v510, %v1104
        %v1106 = vpop.f32.mrb[0].mxu0
        %v1107 = vadd.f32 %v506, %v1106
        %v1108 = vpop.f32.mrb[0].mxu0
        %v1109 = vadd.f32 %v510, %v1108
        %1110 = vmatprep.mubr.bf16.mxu0 %v574
        %1111 = vmatmul.mubr.bf16.gmra.mrb[0].mxu0 %v573
        %v1112 = vpop.f32.mrb[0].mxu0
        %v1113 = vadd.f32 %v506, %v1112
        %v1114 = vpop.f32.mrb[0].mxu0
        %v1115 = vadd.f32 %v510, %v1114
        %v1116 = vpop.f32.mrb[0].mxu0
        %v1117 = vadd.f32 %v506, %v1116
        %v1118 = vpop.f32.mrb[0].mxu0
        %v1119 = vadd.f32 %v510, %v1118
        %1120 = vmatprep.mubr.bf16.mxu0 %v576
        %1121 = vmatmul.mubr.bf16.gmra.mrb[0].mxu0 %v575
        %v1122 = vpop.f32.mrb[0].mxu0
        %v1123 = vadd.f32 %v506, %v1122
        %v1124 = vpop.f32.mrb[0].mxu0
        %v1125 = vadd.f32 %v510, %v1124
        %v1126 = vpop.f32.mrb[0].mxu0
        %v1127 = vadd.f32 %v506, %v1126
        %v1128 = vpop.f32.mrb[0].mxu0
        %v1129 = vadd.f32 %v510, %v1128
        %1130 = vmatprep.mubr.bf16.mxu0 %v578
        %1131 = vmatmul.mubr.bf16.gmra.mrb[0].mxu0 %v577
        %v1132 = vpop.f32.mrb[0].mxu0
        %v1133 = vadd.f32 %v506, %v1132
        %v1134 = vpop.f32.mrb[0].mxu0
        %v1135 = vadd.f32 %v510, %v1134
        %v1136 = vpop.f32.mrb[0].mxu0
        %v1137 = vadd.f32 %v506, %v1136
        %v1138 = vpop.f32.mrb[0].mxu0
        %v1139 = vadd.f32 %v510, %v1138
        %1140 = vdwg.mxu0
        %v1141 = vmul.f32 %v950, 0.035677407
        %v1142 = vmul.f32 %v952, 0.035677407
        %v1143 = vmul.f32 %v1063, 0.035677407
        %v1144 = vmul.f32 %v1065, 0.035677407
        %v1145 = vmul.f32 %v954, 0.035677407
        %v1146 = vmul.f32 %v956, 0.035677407
        %v1147 = vmul.f32 %v1067, 0.035677407
        %v1148 = vmul.f32 %v1069, 0.035677407
        %v1149 = vmul.f32 %v960, 0.035677407
        %v1150 = vmul.f32 %v962, 0.035677407
        %v1151 = vmul.f32 %v1073, 0.035677407
        %v1152 = vmul.f32 %v1075, 0.035677407
        %v1153 = vmul.f32 %v964, 0.035677407
        %v1154 = vmul.f32 %v966, 0.035677407
        %v1155 = vmul.f32 %v1077, 0.035677407
        %v1156 = vmul.f32 %v1079, 0.035677407
        %v1157 = vmul.f32 %v970, 0.035677407
        %v1158 = vmul.f32 %v972, 0.035677407
        %v1159 = vmul.f32 %v1083, 0.035677407
        %v1160 = vmul.f32 %v1085, 0.035677407
        %v1161 = vmul.f32 %v974, 0.035677407
        %v1162 = vmul.f32 %v976, 0.035677407
        %v1163 = vmul.f32 %v1087, 0.035677407
        %v1164 = vmul.f32 %v1089, 0.035677407
        %v1165 = vmul.f32 %v980, 0.035677407
        %v1166 = vmul.f32 %v982, 0.035677407
        %v1167 = vmul.f32 %v1093, 0.035677407
        %v1168 = vmul.f32 %v1095, 0.035677407
        %v1169 = vmul.f32 %v984, 0.035677407
        %v1170 = vmul.f32 %v986, 0.035677407
        %v1171 = vmul.f32 %v1097, 0.035677407
        %v1172 = vmul.f32 %v1099, 0.035677407
        %v1173 = vmul.f32 %v990, 0.035677407
        %v1174 = vmul.f32 %v992, 0.035677407
        %v1175 = vmul.f32 %v1103, 0.035677407
        %v1176 = vmul.f32 %v1105, 0.035677407
        %v1177 = vmul.f32 %v994, 0.035677407
        %v1178 = vmul.f32 %v996, 0.035677407
        %v1179 = vmul.f32 %v1107, 0.035677407
        %v1180 = vmul.f32 %v1109, 0.035677407
        %v1181 = vmul.f32 %v1000, 0.035677407
        %v1182 = vmul.f32 %v1002, 0.035677407
        %v1183 = vmul.f32 %v1113, 0.035677407
        %v1184 = vmul.f32 %v1115, 0.035677407
        %v1185 = vmul.f32 %v1004, 0.035677407
        %v1186 = vmul.f32 %v1006, 0.035677407
        %v1187 = vmul.f32 %v1117, 0.035677407
        %v1188 = vmul.f32 %v1119, 0.035677407
        %v1189 = vmul.f32 %v1010, 0.035677407
        %v1190 = vmul.f32 %v1012, 0.035677407
        %v1191 = vmul.f32 %v1123, 0.035677407
        %v1192 = vmul.f32 %v1125, 0.035677407
        %v1193 = vmul.f32 %v1014, 0.035677407
        %v1194 = vmul.f32 %v1016, 0.035677407
        %v1195 = vmul.f32 %v1127, 0.035677407
        %v1196 = vmul.f32 %v1129, 0.035677407
        %v1197 = vmul.f32 %v1020, 0.035677407
        %v1198 = vmul.f32 %v1022, 0.035677407
        %v1199 = vmul.f32 %v1133, 0.035677407
        %v1200 = vmul.f32 %v1135, 0.035677407
        %v1201 = vmul.f32 %v1024, 0.035677407
        %v1202 = vmul.f32 %v1026, 0.035677407
        %v1203 = vmul.f32 %v1137, 0.035677407
        %v1204 = vmul.f32 %v1139, 0.035677407
        %v1205 = vmul.f32 %v1141, %v950
        %v1206 = vmul.f32 %v1142, %v952
        %v1207 = vmul.f32 %v1143, %v1063
        %v1208 = vmul.f32 %v1144, %v1065
        %v1209 = vmul.f32 %v1145, %v954
        %v1210 = vmul.f32 %v1146, %v956
        %v1211 = vmul.f32 %v1147, %v1067
        %v1212 = vmul.f32 %v1148, %v1069
        %v1213 = vmul.f32 %v1149, %v960
        %v1214 = vmul.f32 %v1150, %v962
        %v1215 = vmul.f32 %v1151, %v1073
        %v1216 = vmul.f32 %v1152, %v1075
        %v1217 = vmul.f32 %v1153, %v964
        %v1218 = vmul.f32 %v1154, %v966
        %v1219 = vmul.f32 %v1155, %v1077
        %v1220 = vmul.f32 %v1156, %v1079
        %v1221 = vmul.f32 %v1157, %v970
        %v1222 = vmul.f32 %v1158, %v972
        %v1223 = vmul.f32 %v1159, %v1083
        %v1224 = vmul.f32 %v1160, %v1085
        %v1225 = vmul.f32 %v1161, %v974
        %v1226 = vmul.f32 %v1162, %v976
        %v1227 = vmul.f32 %v1163, %v1087
        %v1228 = vmul.f32 %v1164, %v1089
        %v1229 = vmul.f32 %v1165, %v980
        %v1230 = vmul.f32 %v1166, %v982
        %v1231 = vmul.f32 %v1167, %v1093
        %v1232 = vmul.f32 %v1168, %v1095
        %v1233 = vmul.f32 %v1169, %v984
        %v1234 = vmul.f32 %v1170, %v986
        %v1235 = vmul.f32 %v1171, %v1097
        %v1236 = vmul.f32 %v1172, %v1099
        %v1237 = vmul.f32 %v1173, %v990
        %v1238 = vmul.f32 %v1174, %v992
        %v1239 = vmul.f32 %v1175, %v1103
        %v1240 = vmul.f32 %v1176, %v1105
        %v1241 = vmul.f32 %v1177, %v994
        %v1242 = vmul.f32 %v1178, %v996
        %v1243 = vmul.f32 %v1179, %v1107
        %v1244 = vmul.f32 %v1180, %v1109
        %v1245 = vmul.f32 %v1181, %v1000
        %v1246 = vmul.f32 %v1182, %v1002
        %v1247 = vmul.f32 %v1183, %v1113
        %v1248 = vmul.f32 %v1184, %v1115
        %v1249 = vmul.f32 %v1185, %v1004
        %v1250 = vmul.f32 %v1186, %v1006
        %v1251 = vmul.f32 %v1187, %v1117
        %v1252 = vmul.f32 %v1188, %v1119
        %v1253 = vmul.f32 %v1189, %v1010
        %v1254 = vmul.f32 %v1190, %v1012
        %v1255 = vmul.f32 %v1191, %v1123
        %v1256 = vmul.f32 %v1192, %v1125
        %v1257 = vmul.f32 %v1193, %v1014
        %v1258 = vmul.f32 %v1194, %v1016
        %v1259 = vmul.f32 %v1195, %v1127
        %v1260 = vmul.f32 %v1196, %v1129
        %v1261 = vmul.f32 %v1197, %v1020
        %v1262 = vmul.f32 %v1198, %v1022
        %v1263 = vmul.f32 %v1199, %v1133
        %v1264 = vmul.f32 %v1200, %v1135
        %v1265 = vmul.f32 %v1201, %v1024
        %v1266 = vmul.f32 %v1202, %v1026
        %v1267 = vmul.f32 %v1203, %v1137
        %v1268 = vmul.f32 %v1204, %v1139
        %v1269 = vadd.f32 %v1205, 0.7978846
        %v1270 = vadd.f32 %v1206, 0.7978846
        %v1271 = vadd.f32 %v1207, 0.7978846
        %v1272 = vadd.f32 %v1208, 0.7978846
        %v1273 = vadd.f32 %v1209, 0.7978846
        %v1274 = vadd.f32 %v1210, 0.7978846
        %v1275 = vadd.f32 %v1211, 0.7978846
        %v1276 = vadd.f32 %v1212, 0.7978846
        %v1277 = vadd.f32 %v1213, 0.7978846
        %v1278 = vadd.f32 %v1214, 0.7978846
        %v1279 = vadd.f32 %v1215, 0.7978846
        %v1280 = vadd.f32 %v1216, 0.7978846
        %v1281 = vadd.f32 %v1217, 0.7978846
        %v1282 = vadd.f32 %v1218, 0.7978846
        %v1283 = vadd.f32 %v1219, 0.7978846
        %v1284 = vadd.f32 %v1220, 0.7978846
        %v1285 = vadd.f32 %v1221, 0.7978846
        %v1286 = vadd.f32 %v1222, 0.7978846
        %v1287 = vadd.f32 %v1223, 0.7978846
        %v1288 = vadd.f32 %v1224, 0.7978846
        %v1289 = vadd.f32 %v1225, 0.7978846
        %v1290 = vadd.f32 %v1226, 0.7978846
        %v1291 = vadd.f32 %v1227, 0.7978846
        %v1292 = vadd.f32 %v1228, 0.7978846
        %v1293 = vadd.f32 %v1229, 0.7978846
        %v1294 = vadd.f32 %v1230, 0.7978846
        %v1295 = vadd.f32 %v1231, 0.7978846
        %v1296 = vadd.f32 %v1232, 0.7978846
        %v1297 = vadd.f32 %v1233, 0.7978846
        %v1298 = vadd.f32 %v1234, 0.7978846
        %v1299 = vadd.f32 %v1235, 0.7978846
        %v1300 = vadd.f32 %v1236, 0.7978846
        %v1301 = vadd.f32 %v1237, 0.7978846
        %v1302 = vadd.f32 %v1238, 0.7978846
        %v1303 = vadd.f32 %v1239, 0.7978846
        %v1304 = vadd.f32 %v1240, 0.7978846
        %v1305 = vadd.f32 %v1241, 0.7978846
        %v1306 = vadd.f32 %v1242, 0.7978846
        %v1307 = vadd.f32 %v1243, 0.7978846
        %v1308 = vadd.f32 %v1244, 0.7978846
        %v1309 = vadd.f32 %v1245, 0.7978846
        %v1310 = vadd.f32 %v1246, 0.7978846
        %v1311 = vadd.f32 %v1247, 0.7978846
        %v1312 = vadd.f32 %v1248, 0.7978846
        %v1313 = vadd.f32 %v1249, 0.7978846
        %v1314 = vadd.f32 %v1250, 0.7978846
        %v1315 = vadd.f32 %v1251, 0.7978846
        %v1316 = vadd.f32 %v1252, 0.7978846
        %v1317 = vadd.f32 %v1253, 0.7978846
        %v1318 = vadd.f32 %v1254, 0.7978846
        %v1319 = vadd.f32 %v1255, 0.7978846
        %v1320 = vadd.f32 %v1256, 0.7978846
        %v1321 = vadd.f32 %v1257, 0.7978846
        %v1322 = vadd.f32 %v1258, 0.7978846
        %v1323 = vadd.f32 %v1259, 0.7978846
        %v1324 = vadd.f32 %v1260, 0.7978846
        %v1325 = vadd.f32 %v1261, 0.7978846
        %v1326 = vadd.f32 %v1262, 0.7978846
        %v1327 = vadd.f32 %v1263, 0.7978846
        %v1328 = vadd.f32 %v1264, 0.7978846
        %v1329 = vadd.f32 %v1265, 0.7978846
        %v1330 = vadd.f32 %v1266, 0.7978846
        %v1331 = vadd.f32 %v1267, 0.7978846
        %v1332 = vadd.f32 %v1268, 0.7978846
        %v1333 = vmul.f32 %v950, %v1269
        %v1334 = vmul.f32 %v952, %v1270
        %v1335 = vmul.f32 %v1063, %v1271
        %v1336 = vmul.f32 %v1065, %v1272
        %v1337 = vmul.f32 %v954, %v1273
        %v1338 = vmul.f32 %v956, %v1274
        %v1339 = vmul.f32 %v1067, %v1275
        %v1340 = vmul.f32 %v1069, %v1276
        %v1341 = vmul.f32 %v960, %v1277
        %v1342 = vmul.f32 %v962, %v1278
        %v1343 = vmul.f32 %v1073, %v1279
        %v1344 = vmul.f32 %v1075, %v1280
        %v1345 = vmul.f32 %v964, %v1281
        %v1346 = vmul.f32 %v966, %v1282
        %v1347 = vmul.f32 %v1077, %v1283
        %v1348 = vmul.f32 %v1079, %v1284
        %v1349 = vmul.f32 %v970, %v1285
        %v1350 = vmul.f32 %v972, %v1286
        %v1351 = vmul.f32 %v1083, %v1287
        %v1352 = vmul.f32 %v1085, %v1288
        %v1353 = vmul.f32 %v974, %v1289
        %v1354 = vmul.f32 %v976, %v1290
        %v1355 = vmul.f32 %v1087, %v1291
        %v1356 = vmul.f32 %v1089, %v1292
        %v1357 = vmul.f32 %v980, %v1293
        %v1358 = vmul.f32 %v982, %v1294
        %v1359 = vmul.f32 %v1093, %v1295
        %v1360 = vmul.f32 %v1095, %v1296
        %v1361 = vmul.f32 %v984, %v1297
        %v1362 = vmul.f32 %v986, %v1298
        %v1363 = vmul.f32 %v1097, %v1299
        %v1364 = vmul.f32 %v1099, %v1300
        %v1365 = vmul.f32 %v990, %v1301
        %v1366 = vmul.f32 %v992, %v1302
        %v1367 = vmul.f32 %v1103, %v1303
        %v1368 = vmul.f32 %v1105, %v1304
        %v1369 = vmul.f32 %v994, %v1305
        %v1370 = vmul.f32 %v996, %v1306
        %v1371 = vmul.f32 %v1107, %v1307
        %v1372 = vmul.f32 %v1109, %v1308
        %v1373 = vmul.f32 %v1000, %v1309
        %v1374 = vmul.f32 %v1002, %v1310
        %v1375 = vmul.f32 %v1113, %v1311
        %v1376 = vmul.f32 %v1115, %v1312
        %v1377 = vmul.f32 %v1004, %v1313
        %v1378 = vmul.f32 %v1006, %v1314
        %v1379 = vmul.f32 %v1117, %v1315
        %v1380 = vmul.f32 %v1119, %v1316
        %v1381 = vmul.f32 %v1010, %v1317
        %v1382 = vmul.f32 %v1012, %v1318
        %v1383 = vmul.f32 %v1123, %v1319
        %v1384 = vmul.f32 %v1125, %v1320
        %v1385 = vmul.f32 %v1014, %v1321
        %v1386 = vmul.f32 %v1016, %v1322
        %v1387 = vmul.f32 %v1127, %v1323
        %v1388 = vmul.f32 %v1129, %v1324
        %v1389 = vmul.f32 %v1020, %v1325
        %v1390 = vmul.f32 %v1022, %v1326
        %v1391 = vmul.f32 %v1133, %v1327
        %v1392 = vmul.f32 %v1135, %v1328
        %v1393 = vmul.f32 %v1024, %v1329
        %v1394 = vmul.f32 %v1026, %v1330
        %v1395 = vmul.f32 %v1137, %v1331
        %v1396 = vmul.f32 %v1139, %v1332
        %v1397 = vmul.f32 %v950, 0.5
        %v1398 = vmul.f32 %v952, 0.5
        %v1399 = vmul.f32 %v1063, 0.5
        %v1400 = vmul.f32 %v1065, 0.5
        %v1401 = vmul.f32 %v954, 0.5
        %v1402 = vmul.f32 %v956, 0.5
        %v1403 = vmul.f32 %v1067, 0.5
        %v1404 = vmul.f32 %v1069, 0.5
        %v1405 = vmul.f32 %v960, 0.5
        %v1406 = vmul.f32 %v962, 0.5
        %v1407 = vmul.f32 %v1073, 0.5
        %v1408 = vmul.f32 %v1075, 0.5
        %v1409 = vmul.f32 %v964, 0.5
        %v1410 = vmul.f32 %v966, 0.5
        %v1411 = vmul.f32 %v1077, 0.5
        %v1412 = vmul.f32 %v1079, 0.5
        %v1413 = vmul.f32 %v970, 0.5
        %v1414 = vmul.f32 %v972, 0.5
        %v1415 = vmul.f32 %v1083, 0.5
        %v1416 = vmul.f32 %v1085, 0.5
        %v1417 = vmul.f32 %v974, 0.5
        %v1418 = vmul.f32 %v976, 0.5
        %v1419 = vmul.f32 %v1087, 0.5
        %v1420 = vmul.f32 %v1089, 0.5
        %v1421 = vmul.f32 %v980, 0.5
        %v1422 = vmul.f32 %v982, 0.5
        %v1423 = vmul.f32 %v1093, 0.5
        %v1424 = vmul.f32 %v1095, 0.5
        %v1425 = vmul.f32 %v984, 0.5
        %v1426 = vmul.f32 %v986, 0.5
        %v1427 = vmul.f32 %v1097, 0.5
        %v1428 = vmul.f32 %v1099, 0.5
        %v1429 = vmul.f32 %v990, 0.5
        %v1430 = vmul.f32 %v992, 0.5
        %v1431 = vmul.f32 %v1103, 0.5
        %v1432 = vmul.f32 %v1105, 0.5
        %v1433 = vmul.f32 %v994, 0.5
        %v1434 = vmul.f32 %v996, 0.5
        %v1435 = vmul.f32 %v1107, 0.5
        %v1436 = vmul.f32 %v1109, 0.5
        %v1437 = vmul.f32 %v1000, 0.5
        %v1438 = vmul.f32 %v1002, 0.5
        %v1439 = vmul.f32 %v1113, 0.5
        %v1440 = vmul.f32 %v1115, 0.5
        %v1441 = vmul.f32 %v1004, 0.5
        %v1442 = vmul.f32 %v1006, 0.5
        %v1443 = vmul.f32 %v1117, 0.5
        %v1444 = vmul.f32 %v1119, 0.5
        %v1445 = vmul.f32 %v1010, 0.5
        %v1446 = vmul.f32 %v1012, 0.5
        %v1447 = vmul.f32 %v1123, 0.5
        %v1448 = vmul.f32 %v1125, 0.5
        %v1449 = vmul.f32 %v1014, 0.5
        %v1450 = vmul.f32 %v1016, 0.5
        %v1451 = vmul.f32 %v1127, 0.5
        %v1452 = vmul.f32 %v1129, 0.5
        %v1453 = vmul.f32 %v1020, 0.5
        %v1454 = vmul.f32 %v1022, 0.5
        %v1455 = vmul.f32 %v1133, 0.5
        %v1456 = vmul.f32 %v1135, 0.5
        %v1457 = vmul.f32 %v1024, 0.5
        %v1458 = vmul.f32 %v1026, 0.5
        %v1459 = vmul.f32 %v1137, 0.5
        %v1460 = vmul.f32 %v1139, 0.5
        %v1461 = vtanh.pop %v1333
        %v1462 = vtanh.pop %v1334
        %v1463 = vtanh.pop %v1335
        %v1464 = vtanh.pop %v1336
        %v1465 = vtanh.pop %v1337
        %v1466 = vtanh.pop %v1338
        %v1467 = vtanh.pop %v1339
        %v1468 = vtanh.pop %v1340
        %v1469 = vtanh.pop %v1341
        %v1470 = vtanh.pop %v1342
        %v1471 = vtanh.pop %v1343
        %v1472 = vtanh.pop %v1344
        %v1473 = vtanh.pop %v1345
        %v1474 = vtanh.pop %v1346
        %v1475 = vtanh.pop %v1347
        %v1476 = vtanh.pop %v1348
        %v1477 = vtanh.pop %v1349
        %v1478 = vtanh.pop %v1350
        %v1479 = vtanh.pop %v1351
        %v1480 = vtanh.pop %v1352
        %v1481 = vtanh.pop %v1353
        %v1482 = vtanh.pop %v1354
        %v1483 = vtanh.pop %v1355
        %v1484 = vtanh.pop %v1356
        %v1485 = vtanh.pop %v1357
        %v1486 = vtanh.pop %v1358
        %v1487 = vtanh.pop %v1359
        %v1488 = vtanh.pop %v1360
        %v1489 = vtanh.pop %v1361
        %v1490 = vtanh.pop %v1362
        %v1491 = vtanh.pop %v1363
        %v1492 = vtanh.pop %v1364
        %v1493 = vtanh.pop %v1365
        %v1494 = vtanh.pop %v1366
        %v1495 = vtanh.pop %v1367
        %v1496 = vtanh.pop %v1368
        %v1497 = vtanh.pop %v1369
        %v1498 = vtanh.pop %v1370
        %v1499 = vtanh.pop %v1371
        %v1500 = vtanh.pop %v1372
        %v1501 = vtanh.pop %v1373
        %v1502 = vtanh.pop %v1374
        %v1503 = vtanh.pop %v1375
        %v1504 = vtanh.pop %v1376
        %v1505 = vtanh.pop %v1377
        %v1506 = vtanh.pop %v1378
        %v1507 = vtanh.pop %v1379
        %v1508 = vtanh.pop %v1380
        %v1509 = vtanh.pop %v1381
        %v1510 = vtanh.pop %v1382
        %v1511 = vtanh.pop %v1383
        %v1512 = vtanh.pop %v1384
        %v1513 = vtanh.pop %v1385
        %v1514 = vtanh.pop %v1386
        %v1515 = vtanh.pop %v1387
        %v1516 = vtanh.pop %v1388
        %v1517 = vtanh.pop %v1389
        %v1518 = vtanh.pop %v1390
        %v1519 = vtanh.pop %v1391
        %v1520 = vtanh.pop %v1392
        %v1521 = vtanh.pop %v1393
        %v1522 = vtanh.pop %v1394
        %v1523 = vtanh.pop %v1395
        %v1524 = vtanh.pop %v1396
        %v1525 = vadd.f32 %v1461, 1.0
        %v1526 = vadd.f32 %v1462, 1.0
        %v1527 = vadd.f32 %v1463, 1.0
        %v1528 = vadd.f32 %v1464, 1.0
        %v1529 = vadd.f32 %v1465, 1.0
        %v1530 = vadd.f32 %v1466, 1.0
        %v1531 = vadd.f32 %v1467, 1.0
        %v1532 = vadd.f32 %v1468, 1.0
        %v1533 = vadd.f32 %v1469, 1.0
        %v1534 = vadd.f32 %v1470, 1.0
        %v1535 = vadd.f32 %v1471, 1.0
        %v1536 = vadd.f32 %v1472, 1.0
        %v1537 = vadd.f32 %v1473, 1.0
        %v1538 = vadd.f32 %v1474, 1.0
        %v1539 = vadd.f32 %v1475, 1.0
        %v1540 = vadd.f32 %v1476, 1.0
        %v1541 = vadd.f32 %v1477, 1.0
        %v1542 = vadd.f32 %v1478, 1.0
        %v1543 = vadd.f32 %v1479, 1.0
        %v1544 = vadd.f32 %v1480, 1.0
        %v1545 = vadd.f32 %v1481, 1.0
        %v1546 = vadd.f32 %v1482, 1.0
        %v1547 = vadd.f32 %v1483, 1.0
        %v1548 = vadd.f32 %v1484, 1.0
        %v1549 = vadd.f32 %v1485, 1.0
        %v1550 = vadd.f32 %v1486, 1.0
        %v1551 = vadd.f32 %v1487, 1.0
        %v1552 = vadd.f32 %v1488, 1.0
        %v1553 = vadd.f32 %v1489, 1.0
        %v1554 = vadd.f32 %v1490, 1.0
        %v1555 = vadd.f32 %v1491, 1.0
        %v1556 = vadd.f32 %v1492, 1.0
        %v1557 = vadd.f32 %v1493, 1.0
        %v1558 = vadd.f32 %v1494, 1.0
        %v1559 = vadd.f32 %v1495, 1.0
        %v1560 = vadd.f32 %v1496, 1.0
        %v1561 = vadd.f32 %v1497, 1.0
        %v1562 = vadd.f32 %v1498, 1.0
        %v1563 = vadd.f32 %v1499, 1.0
        %v1564 = vadd.f32 %v1500, 1.0
        %v1565 = vadd.f32 %v1501, 1.0
        %v1566 = vadd.f32 %v1502, 1.0
        %v1567 = vadd.f32 %v1503, 1.0
        %v1568 = vadd.f32 %v1504, 1.0
        %v1569 = vadd.f32 %v1505, 1.0
        %v1570 = vadd.f32 %v1506, 1.0
        %v1571 = vadd.f32 %v1507, 1.0
        %v1572 = vadd.f32 %v1508, 1.0
        %v1573 = vadd.f32 %v1509, 1.0
        %v1574 = vadd.f32 %v1510, 1.0
        %v1575 = vadd.f32 %v1511, 1.0
        %v1576 = vadd.f32 %v1512, 1.0
        %v1577 = vadd.f32 %v1513, 1.0
        %v1578 = vadd.f32 %v1514, 1.0
        %v1579 = vadd.f32 %v1515, 1.0
        %v1580 = vadd.f32 %v1516, 1.0
        %v1581 = vadd.f32 %v1517, 1.0
        %v1582 = vadd.f32 %v1518, 1.0
        %v1583 = vadd.f32 %v1519, 1.0
        %v1584 = vadd.f32 %v1520, 1.0
        %v1585 = vadd.f32 %v1521, 1.0
        %v1586 = vadd.f32 %v1522, 1.0
        %v1587 = vadd.f32 %v1523, 1.0
        %v1588 = vadd.f32 %v1524, 1.0
        %v1589 = vmul.f32 %v1397, %v1525
        %v1590 = vmul.f32 %v1398, %v1526
        %v1591 = vmul.f32 %v1399, %v1527
        %v1592 = vmul.f32 %v1400, %v1528
        %v1593 = vmul.f32 %v1401, %v1529
        %v1594 = vmul.f32 %v1402, %v1530
        %v1595 = vmul.f32 %v1403, %v1531
        %v1596 = vmul.f32 %v1404, %v1532
        %v1597 = vmul.f32 %v1405, %v1533
        %v1598 = vmul.f32 %v1406, %v1534
        %v1599 = vmul.f32 %v1407, %v1535
        %v1600 = vmul.f32 %v1408, %v1536
        %v1601 = vmul.f32 %v1409, %v1537
        %v1602 = vmul.f32 %v1410, %v1538
        %v1603 = vmul.f32 %v1411, %v1539
        %v1604 = vmul.f32 %v1412, %v1540
        %v1605 = vmul.f32 %v1413, %v1541
        %v1606 = vmul.f32 %v1414, %v1542
        %v1607 = vmul.f32 %v1415, %v1543
        %v1608 = vmul.f32 %v1416, %v1544
        %v1609 = vmul.f32 %v1417, %v1545
        %v1610 = vmul.f32 %v1418, %v1546
        %v1611 = vmul.f32 %v1419, %v1547
        %v1612 = vmul.f32 %v1420, %v1548
        %v1613 = vmul.f32 %v1421, %v1549
        %v1614 = vmul.f32 %v1422, %v1550
        %v1615 = vmul.f32 %v1423, %v1551
        %v1616 = vmul.f32 %v1424, %v1552
        %v1617 = vmul.f32 %v1425, %v1553
        %v1618 = vmul.f32 %v1426, %v1554
        %v1619 = vmul.f32 %v1427, %v1555
        %v1620 = vmul.f32 %v1428, %v1556
        %v1621 = vmul.f32 %v1429, %v1557
        %v1622 = vmul.f32 %v1430, %v1558
        %v1623 = vmul.f32 %v1431, %v1559
        %v1624 = vmul.f32 %v1432, %v1560
        %v1625 = vmul.f32 %v1433, %v1561
        %v1626 = vmul.f32 %v1434, %v1562
        %v1627 = vmul.f32 %v1435, %v1563
        %v1628 = vmul.f32 %v1436, %v1564
        %v1629 = vmul.f32 %v1437, %v1565
        %v1630 = vmul.f32 %v1438, %v1566
        %v1631 = vmul.f32 %v1439, %v1567
        %v1632 = vmul.f32 %v1440, %v1568
        %v1633 = vmul.f32 %v1441, %v1569
        %v1634 = vmul.f32 %v1442, %v1570
        %v1635 = vmul.f32 %v1443, %v1571
        %v1636 = vmul.f32 %v1444, %v1572
        %v1637 = vmul.f32 %v1445, %v1573
        %v1638 = vmul.f32 %v1446, %v1574
        %v1639 = vmul.f32 %v1447, %v1575
        %v1640 = vmul.f32 %v1448, %v1576
        %v1641 = vmul.f32 %v1449, %v1577
        %v1642 = vmul.f32 %v1450, %v1578
        %v1643 = vmul.f32 %v1451, %v1579
        %v1644 = vmul.f32 %v1452, %v1580
        %v1645 = vmul.f32 %v1453, %v1581
        %v1646 = vmul.f32 %v1454, %v1582
        %v1647 = vmul.f32 %v1455, %v1583
        %v1648 = vmul.f32 %v1456, %v1584
        %v1649 = vmul.f32 %v1457, %v1585
        %v1650 = vmul.f32 %v1458, %v1586
        %v1651 = vmul.f32 %v1459, %v1587
        %v1652 = vmul.f32 %v1460, %v1588
        %v1653 = vld [vmem:[#allocation2] sm:$0xff]
        %v1654 = vld [vmem:[#allocation2 + $0x8] sm:$0xff]
        %v1655 = vld [vmem:[#allocation2 + $0x10] sm:$0xff]
        %v1656 = vld [vmem:[#allocation2 + $0x18] sm:$0xff]
        %v1657 = vld [vmem:[#allocation2 + $0x20] sm:$0xff]
        %v1658 = vld [vmem:[#allocation2 + $0x28] sm:$0xff]
        %v1659 = vld [vmem:[#allocation2 + $0x30] sm:$0xff]
        %v1660 = vld [vmem:[#allocation2 + $0x38] sm:$0xff]
        %v1661 = vld [vmem:[#allocation2 + $0x40] sm:$0xff]
        %v1662 = vld [vmem:[#allocation2 + $0x48] sm:$0xff]
        %v1663 = vld [vmem:[#allocation2 + $0x50] sm:$0xff]
        %v1664 = vld [vmem:[#allocation2 + $0x58] sm:$0xff]
        %v1665 = vld [vmem:[#allocation2 + $0x60] sm:$0xff]
        %v1666 = vld [vmem:[#allocation2 + $0x68] sm:$0xff]
        %v1667 = vld [vmem:[#allocation2 + $0x70] sm:$0xff]
        %v1668 = vld [vmem:[#allocation2 + $0x78] sm:$0xff]
        %v1669 = vld [vmem:[#allocation2 + $0x80] sm:$0xff]
        %v1670 = vld [vmem:[#allocation2 + $0x88] sm:$0xff]
        %v1671 = vld [vmem:[#allocation2 + $0x90] sm:$0xff]
        %v1672 = vld [vmem:[#allocation2 + $0x98] sm:$0xff]
        %v1673 = vld [vmem:[#allocation2 + $0xa0] sm:$0xff]
        %v1674 = vld [vmem:[#allocation2 + $0xa8] sm:$0xff]
        %v1675 = vld [vmem:[#allocation2 + $0xb0] sm:$0xff]
        %v1676 = vld [vmem:[#allocation2 + $0xb8] sm:$0xff]
        %v1677 = vld [vmem:[#allocation2 + $0xc0] sm:$0xff]
        %v1678 = vld [vmem:[#allocation2 + $0xc8] sm:$0xff]
        %v1679 = vld [vmem:[#allocation2 + $0xd0] sm:$0xff]
        %v1680 = vld [vmem:[#allocation2 + $0xd8] sm:$0xff]
        %v1681 = vld [vmem:[#allocation2 + $0xe0] sm:$0xff]
        %v1682 = vld [vmem:[#allocation2 + $0xe8] sm:$0xff]
        %v1683 = vld [vmem:[#allocation2 + $0xf0] sm:$0xff]
        %v1684 = vld [vmem:[#allocation2 + $0xf8] sm:$0xff]
        %v1685 = vpack.c.bf16 %v1593, %v1589
        %v1686 = vpack.c.bf16 %v1594, %v1590
        %v1687 = vpack.c.bf16 %v1595, %v1591
        %v1688 = vpack.c.bf16 %v1596, %v1592
        %v1689 = vpack.c.bf16 %v1601, %v1597
        %v1690 = vpack.c.bf16 %v1602, %v1598
        %v1691 = vpack.c.bf16 %v1603, %v1599
        %v1692 = vpack.c.bf16 %v1604, %v1600
        %v1693 = vpack.c.bf16 %v1609, %v1605
        %v1694 = vpack.c.bf16 %v1610, %v1606
        %v1695 = vpack.c.bf16 %v1611, %v1607
        %v1696 = vpack.c.bf16 %v1612, %v1608
        %v1697 = vpack.c.bf16 %v1617, %v1613
        %v1698 = vpack.c.bf16 %v1618, %v1614
        %v1699 = vpack.c.bf16 %v1619, %v1615
        %v1700 = vpack.c.bf16 %v1620, %v1616
        %v1701 = vpack.c.bf16 %v1625, %v1621
        %v1702 = vpack.c.bf16 %v1626, %v1622
        %v1703 = vpack.c.bf16 %v1627, %v1623
        %v1704 = vpack.c.bf16 %v1628, %v1624
        %v1705 = vpack.c.bf16 %v1633, %v1629
        %v1706 = vpack.c.bf16 %v1634, %v1630
        %v1707 = vpack.c.bf16 %v1635, %v1631
        %v1708 = vpack.c.bf16 %v1636, %v1632
        %v1709 = vpack.c.bf16 %v1641, %v1637
        %v1710 = vpack.c.bf16 %v1642, %v1638
        %v1711 = vpack.c.bf16 %v1643, %v1639
        %v1712 = vpack.c.bf16 %v1644, %v1640
        %v1713 = vpack.c.bf16 %v1649, %v1645
        %v1714 = vpack.c.bf16 %v1650, %v1646
        %v1715 = vpack.c.bf16 %v1651, %v1647
        %v1716 = vpack.c.bf16 %v1652, %v1648
        %v1717 = vld [vmem:[%s330] sm:$0xff]
        %v1718 = vld [vmem:[%s330 + $0x8] sm:$0xff]
        %v1719 = vld [vmem:[%s330 + $0x10] sm:$0xff]
        %v1720 = vld [vmem:[%s330 + $0x18] sm:$0xff]
        %v1721 = vld [vmem:[%s330 + $0x20] sm:$0xff]
        %v1722 = vld [vmem:[%s330 + $0x28] sm:$0xff]
        %v1723 = vld [vmem:[%s330 + $0x30] sm:$0xff]
        %v1724 = vld [vmem:[%s330 + $0x38] sm:$0xff]
        %v1725 = vld [vmem:[%s330 + $0x40] sm:$0xff]
        %v1726 = vld [vmem:[%s330 + $0x48] sm:$0xff]
        %v1727 = vld [vmem:[%s330 + $0x50] sm:$0xff]
        %v1728 = vld [vmem:[%s330 + $0x58] sm:$0xff]
        %v1729 = vld [vmem:[%s330 + $0x60] sm:$0xff]
        %v1730 = vld [vmem:[%s330 + $0x68] sm:$0xff]
        %v1731 = vld [vmem:[%s330 + $0x70] sm:$0xff]
        %v1732 = vld [vmem:[%s330 + $0x78] sm:$0xff]
        %v1733 = vld [vmem:[%s330 + $0x80] sm:$0xff]
        %v1734 = vld [vmem:[%s330 + $0x88] sm:$0xff]
        %v1735 = vld [vmem:[%s330 + $0x90] sm:$0xff]
        %v1736 = vld [vmem:[%s330 + $0x98] sm:$0xff]
        %v1737 = vld [vmem:[%s330 + $0xa0] sm:$0xff]
        %v1738 = vld [vmem:[%s330 + $0xa8] sm:$0xff]
        %v1739 = vld [vmem:[%s330 + $0xb0] sm:$0xff]
        %v1740 = vld [vmem:[%s330 + $0xb8] sm:$0xff]
        %v1741 = vld [vmem:[%s330 + $0xc0] sm:$0xff]
        %v1742 = vld [vmem:[%s330 + $0xc8] sm:$0xff]
        %v1743 = vld [vmem:[%s330 + $0xd0] sm:$0xff]
        %v1744 = vld [vmem:[%s330 + $0xd8] sm:$0xff]
        %v1745 = vld [vmem:[%s330 + $0xe0] sm:$0xff]
        %v1746 = vld [vmem:[%s330 + $0xe8] sm:$0xff]
        %v1747 = vld [vmem:[%s330 + $0xf0] sm:$0xff]
        %v1748 = vld [vmem:[%s330 + $0xf8] sm:$0xff]
        %v1749 = vld [vmem:[%s330 + $0x100] sm:$0xff]
        %v1750 = vld [vmem:[%s330 + $0x108] sm:$0xff]
        %v1751 = vld [vmem:[%s330 + $0x110] sm:$0xff]
        %v1752 = vld [vmem:[%s330 + $0x118] sm:$0xff]
        %v1753 = vld [vmem:[%s330 + $0x120] sm:$0xff]
        %v1754 = vld [vmem:[%s330 + $0x128] sm:$0xff]
        %v1755 = vld [vmem:[%s330 + $0x130] sm:$0xff]
        %v1756 = vld [vmem:[%s330 + $0x138] sm:$0xff]
        %v1757 = vld [vmem:[%s330 + $0x140] sm:$0xff]
        %v1758 = vld [vmem:[%s330 + $0x148] sm:$0xff]
        %v1759 = vld [vmem:[%s330 + $0x150] sm:$0xff]
        %v1760 = vld [vmem:[%s330 + $0x158] sm:$0xff]
        %v1761 = vld [vmem:[%s330 + $0x160] sm:$0xff]
        %v1762 = vld [vmem:[%s330 + $0x168] sm:$0xff]
        %v1763 = vld [vmem:[%s330 + $0x170] sm:$0xff]
        %v1764 = vld [vmem:[%s330 + $0x178] sm:$0xff]
        %v1765 = vld [vmem:[%s330 + $0x180] sm:$0xff]
        %v1766 = vld [vmem:[%s330 + $0x188] sm:$0xff]
        %v1767 = vld [vmem:[%s330 + $0x190] sm:$0xff]
        %v1768 = vld [vmem:[%s330 + $0x198] sm:$0xff]
        %v1769 = vld [vmem:[%s330 + $0x1a0] sm:$0xff]
        %v1770 = vld [vmem:[%s330 + $0x1a8] sm:$0xff]
        %v1771 = vld [vmem:[%s330 + $0x1b0] sm:$0xff]
        %v1772 = vld [vmem:[%s330 + $0x1b8] sm:$0xff]
        %v1773 = vld [vmem:[%s330 + $0x1c0] sm:$0xff]
        %v1774 = vld [vmem:[%s330 + $0x1c8] sm:$0xff]
        %v1775 = vld [vmem:[%s330 + $0x1d0] sm:$0xff]
        %v1776 = vld [vmem:[%s330 + $0x1d8] sm:$0xff]
        %v1777 = vld [vmem:[%s330 + $0x1e0] sm:$0xff]
        %v1778 = vld [vmem:[%s330 + $0x1e8] sm:$0xff]
        %v1779 = vld [vmem:[%s330 + $0x1f0] sm:$0xff]
        %v1780 = vld [vmem:[%s330 + $0x1f8] sm:$0xff]
        %v1845 = vunpack.c.l.b16 %v1717
        %v1846 = vunpack.c.h.b16 %v1717
        %v1847 = vunpack.c.l.b16 %v1718
        %v1848 = vunpack.c.h.b16 %v1718
        %v1849 = vunpack.c.l.b16 %v1719
        %v1850 = vunpack.c.h.b16 %v1719
        %v1851 = vunpack.c.l.b16 %v1720
        %v1852 = vunpack.c.h.b16 %v1720
        %v1853 = vunpack.c.l.b16 %v1721
        %v1854 = vunpack.c.h.b16 %v1721
        %v1855 = vunpack.c.l.b16 %v1722
        %v1856 = vunpack.c.h.b16 %v1722
        %v1857 = vunpack.c.l.b16 %v1723
        %v1858 = vunpack.c.h.b16 %v1723
        %v1859 = vunpack.c.l.b16 %v1724
        %v1860 = vunpack.c.h.b16 %v1724
        %v1861 = vunpack.c.l.b16 %v1725
        %v1862 = vunpack.c.h.b16 %v1725
        %v1863 = vunpack.c.l.b16 %v1726
        %v1864 = vunpack.c.h.b16 %v1726
        %v1865 = vunpack.c.l.b16 %v1727
        %v1866 = vunpack.c.h.b16 %v1727
        %v1867 = vunpack.c.l.b16 %v1728
        %v1868 = vunpack.c.h.b16 %v1728
        %v1869 = vunpack.c.l.b16 %v1729
        %v1870 = vunpack.c.h.b16 %v1729
        %v1871 = vunpack.c.l.b16 %v1730
        %v1872 = vunpack.c.h.b16 %v1730
        %v1873 = vunpack.c.l.b16 %v1731
        %v1874 = vunpack.c.h.b16 %v1731
        %v1875 = vunpack.c.l.b16 %v1732
        %v1876 = vunpack.c.h.b16 %v1732
        %v1877 = vunpack.c.l.b16 %v1733
        %v1878 = vunpack.c.h.b16 %v1733
        %v1879 = vunpack.c.l.b16 %v1734
        %v1880 = vunpack.c.h.b16 %v1734
        %v1881 = vunpack.c.l.b16 %v1735
        %v1882 = vunpack.c.h.b16 %v1735
        %v1883 = vunpack.c.l.b16 %v1736
        %v1884 = vunpack.c.h.b16 %v1736
        %v1885 = vunpack.c.l.b16 %v1737
        %v1886 = vunpack.c.h.b16 %v1737
        %v1887 = vunpack.c.l.b16 %v1738
        %v1888 = vunpack.c.h.b16 %v1738
        %v1889 = vunpack.c.l.b16 %v1739
        %v1890 = vunpack.c.h.b16 %v1739
        %v1891 = vunpack.c.l.b16 %v1740
        %v1892 = vunpack.c.h.b16 %v1740
        %v1893 = vunpack.c.l.b16 %v1741
        %v1894 = vunpack.c.h.b16 %v1741
        %v1895 = vunpack.c.l.b16 %v1742
        %v1896 = vunpack.c.h.b16 %v1742
        %v1897 = vunpack.c.l.b16 %v1743
        %v1898 = vunpack.c.h.b16 %v1743
        %v1899 = vunpack.c.l.b16 %v1744
        %v1900 = vunpack.c.h.b16 %v1744
        %v1901 = vunpack.c.l.b16 %v1745
        %v1902 = vunpack.c.h.b16 %v1745
        %v1903 = vunpack.c.l.b16 %v1746
        %v1904 = vunpack.c.h.b16 %v1746
        %v1905 = vunpack.c.l.b16 %v1747
        %v1906 = vunpack.c.h.b16 %v1747
        %v1907 = vunpack.c.l.b16 %v1748
        %v1908 = vunpack.c.h.b16 %v1748
        %v1909 = vunpack.c.l.b16 %v1749
        %v1910 = vunpack.c.h.b16 %v1749
        %v1911 = vunpack.c.l.b16 %v1750
        %v1912 = vunpack.c.h.b16 %v1750
        %v1913 = vunpack.c.l.b16 %v1751
        %v1914 = vunpack.c.h.b16 %v1751
        %v1915 = vunpack.c.l.b16 %v1752
        %v1916 = vunpack.c.h.b16 %v1752
        %v1917 = vunpack.c.l.b16 %v1753
        %v1918 = vunpack.c.h.b16 %v1753
        %v1919 = vunpack.c.l.b16 %v1754
        %v1920 = vunpack.c.h.b16 %v1754
        %v1921 = vunpack.c.l.b16 %v1755
        %v1922 = vunpack.c.h.b16 %v1755
        %v1923 = vunpack.c.l.b16 %v1756
        %v1924 = vunpack.c.h.b16 %v1756
        %v1925 = vunpack.c.l.b16 %v1757
        %v1926 = vunpack.c.h.b16 %v1757
        %v1927 = vunpack.c.l.b16 %v1758
        %v1928 = vunpack.c.h.b16 %v1758
        %v1929 = vunpack.c.l.b16 %v1759
        %v1930 = vunpack.c.h.b16 %v1759
        %v1931 = vunpack.c.l.b16 %v1760
        %v1932 = vunpack.c.h.b16 %v1760
        %v1933 = vunpack.c.l.b16 %v1761
        %v1934 = vunpack.c.h.b16 %v1761
        %v1935 = vunpack.c.l.b16 %v1762
        %v1936 = vunpack.c.h.b16 %v1762
        %v1937 = vunpack.c.l.b16 %v1763
        %v1938 = vunpack.c.h.b16 %v1763
        %v1939 = vunpack.c.l.b16 %v1764
        %v1940 = vunpack.c.h.b16 %v1764
        %v1941 = vunpack.c.l.b16 %v1765
        %v1942 = vunpack.c.h.b16 %v1765
        %v1943 = vunpack.c.l.b16 %v1766
        %v1944 = vunpack.c.h.b16 %v1766
        %v1945 = vunpack.c.l.b16 %v1767
        %v1946 = vunpack.c.h.b16 %v1767
        %v1947 = vunpack.c.l.b16 %v1768
        %v1948 = vunpack.c.h.b16 %v1768
        %v1949 = vunpack.c.l.b16 %v1769
        %v1950 = vunpack.c.h.b16 %v1769
        %v1951 = vunpack.c.l.b16 %v1770
        %v1952 = vunpack.c.h.b16 %v1770
        %v1953 = vunpack.c.l.b16 %v1771
        %v1954 = vunpack.c.h.b16 %v1771
        %v1955 = vunpack.c.l.b16 %v1772
        %v1956 = vunpack.c.h.b16 %v1772
        %v1957 = vunpack.c.l.b16 %v1773
        %v1958 = vunpack.c.h.b16 %v1773
        %v1959 = vunpack.c.l.b16 %v1774
        %v1960 = vunpack.c.h.b16 %v1774
        %v1961 = vunpack.c.l.b16 %v1775
        %v1962 = vunpack.c.h.b16 %v1775
        %v1963 = vunpack.c.l.b16 %v1776
        %v1964 = vunpack.c.h.b16 %v1776
        %v1965 = vunpack.c.l.b16 %v1777
        %v1966 = vunpack.c.h.b16 %v1777
        %v1967 = vunpack.c.l.b16 %v1778
        %v1968 = vunpack.c.h.b16 %v1778
        %v1969 = vunpack.c.l.b16 %v1779
        %v1970 = vunpack.c.h.b16 %v1779
        %v1971 = vunpack.c.l.b16 %v1780
        %v1972 = vunpack.c.h.b16 %v1780
        %v1973 = vpack.c.b16 %v1847, %v1845
        %v1974 = vpack.c.b16 %v1848, %v1846
        %v1975 = vpack.c.b16 %v1851, %v1849
        %v1976 = vpack.c.b16 %v1852, %v1850
        %v1977 = vpack.c.b16 %v1855, %v1853
        %v1978 = vpack.c.b16 %v1856, %v1854
        %v1979 = vpack.c.b16 %v1859, %v1857
        %v1980 = vpack.c.b16 %v1860, %v1858
        %v1981 = vpack.c.b16 %v1863, %v1861
        %v1982 = vpack.c.b16 %v1864, %v1862
        %v1983 = vpack.c.b16 %v1867, %v1865
        %v1984 = vpack.c.b16 %v1868, %v1866
        %v1985 = vpack.c.b16 %v1871, %v1869
        %v1986 = vpack.c.b16 %v1872, %v1870
        %v1987 = vpack.c.b16 %v1875, %v1873
        %v1988 = vpack.c.b16 %v1876, %v1874
        %v1989 = vpack.c.b16 %v1879, %v1877
        %v1990 = vpack.c.b16 %v1880, %v1878
        %v1991 = vpack.c.b16 %v1883, %v1881
        %v1992 = vpack.c.b16 %v1884, %v1882
        %v1993 = vpack.c.b16 %v1887, %v1885
        %v1994 = vpack.c.b16 %v1888, %v1886
        %v1995 = vpack.c.b16 %v1891, %v1889
        %v1996 = vpack.c.b16 %v1892, %v1890
        %v1997 = vpack.c.b16 %v1895, %v1893
        %v1998 = vpack.c.b16 %v1896, %v1894
        %v1999 = vpack.c.b16 %v1899, %v1897
        %v2000 = vpack.c.b16 %v1900, %v1898
        %v2001 = vpack.c.b16 %v1903, %v1901
        %v2002 = vpack.c.b16 %v1904, %v1902
        %v2003 = vpack.c.b16 %v1907, %v1905
        %v2004 = vpack.c.b16 %v1908, %v1906
        %v2005 = vpack.c.b16 %v1911, %v1909
        %v2006 = vpack.c.b16 %v1912, %v1910
        %v2007 = vpack.c.b16 %v1915, %v1913
        %v2008 = vpack.c.b16 %v1916, %v1914
        %v2009 = vpack.c.b16 %v1919, %v1917
        %v2010 = vpack.c.b16 %v1920, %v1918
        %v2011 = vpack.c.b16 %v1923, %v1921
        %v2012 = vpack.c.b16 %v1924, %v1922
        %v2013 = vpack.c.b16 %v1927, %v1925
        %v2014 = vpack.c.b16 %v1928, %v1926
        %v2015 = vpack.c.b16 %v1931, %v1929
        %v2016 = vpack.c.b16 %v1932, %v1930
        %v2017 = vpack.c.b16 %v1935, %v1933
        %v2018 = vpack.c.b16 %v1936, %v1934
        %v2019 = vpack.c.b16 %v1939, %v1937
        %v2020 = vpack.c.b16 %v1940, %v1938
        %v2021 = vpack.c.b16 %v1943, %v1941
        %v2022 = vpack.c.b16 %v1944, %v1942
        %v2023 = vpack.c.b16 %v1947, %v1945
        %v2024 = vpack.c.b16 %v1948, %v1946
        %v2025 = vpack.c.b16 %v1951, %v1949
        %v2026 = vpack.c.b16 %v1952, %v1950
        %v2027 = vpack.c.b16 %v1955, %v1953
        %v2028 = vpack.c.b16 %v1956, %v1954
        %v2029 = vpack.c.b16 %v1959, %v1957
        %v2030 = vpack.c.b16 %v1960, %v1958
        %v2031 = vpack.c.b16 %v1963, %v1961
        %v2032 = vpack.c.b16 %v1964, %v1962
        %v2033 = vpack.c.b16 %v1967, %v1965
        %v2034 = vpack.c.b16 %v1968, %v1966
        %v2035 = vpack.c.b16 %v1971, %v1969
        %v2036 = vpack.c.b16 %v1972, %v1970
        %2101 = vmatprep.subr.bf16.mxu0 %v1974
        %2102 = vmatpush1.bf16.msra.mxu0 %v1973
        %2103 = vmatprep.subr.bf16.mxu0 %v1976
        %2104 = vmatpush1.bf16.msra.mxu0 %v1975
        %2105 = vmatprep.subr.bf16.mxu0 %v1978
        %2106 = vmatpush1.bf16.msra.mxu0 %v1977
        %2107 = vmatprep.subr.bf16.mxu0 %v1980
        %2108 = vmatpush1.bf16.msra.mxu0 %v1979
        %2109 = vmatprep.subr.bf16.mxu0 %v1982
        %2110 = vmatpush1.bf16.msra.mxu0 %v1981
        %2111 = vmatprep.subr.bf16.mxu0 %v1984
        %2112 = vmatpush1.bf16.msra.mxu0 %v1983
        %2113 = vmatprep.subr.bf16.mxu0 %v1986
        %2114 = vmatpush1.bf16.msra.mxu0 %v1985
        %2115 = vmatprep.subr.bf16.mxu0 %v1988
        %2116 = vmatpush1.bf16.msra.mxu0 %v1987
        %2117 = vmatprep.subr.bf16.mxu0 %v1990
        %2118 = vmatpush1.bf16.msra.mxu0 %v1989
        %2119 = vmatprep.subr.bf16.mxu0 %v1992
        %2120 = vmatpush1.bf16.msra.mxu0 %v1991
        %2121 = vmatprep.subr.bf16.mxu0 %v1994
        %2122 = vmatpush1.bf16.msra.mxu0 %v1993
        %2123 = vmatprep.subr.bf16.mxu0 %v1996
        %2124 = vmatpush1.bf16.msra.mxu0 %v1995
        %2125 = vmatprep.subr.bf16.mxu0 %v1998
        %2126 = vmatpush1.bf16.msra.mxu0 %v1997
        %2127 = vmatprep.subr.bf16.mxu0 %v2000
        %2128 = vmatpush1.bf16.msra.mxu0 %v1999
        %2129 = vmatprep.subr.bf16.mxu0 %v2002
        %2130 = vmatpush1.bf16.msra.mxu0 %v2001
        %2131 = vmatprep.subr.bf16.mxu0 %v2004
        %2132 = vmatpush1.bf16.msra.mxu0 %v2003
        %2133 = vmatprep.mubr.bf16.mxu0 %v1686
        %2134 = vmatmul.mubr.bf16.gmra.mrb[0].mxu0 %v1685
        %v2135 = vpop.f32.mrb[0].mxu0
        %v2136 = vadd.f32 0.0, %v2135
        %v2137 = vpop.f32.mrb[0].mxu0
        %v2138 = vadd.f32 0.0, %v2137
        %v2139 = vpop.f32.mrb[0].mxu0
        %v2140 = vadd.f32 0.0, %v2139
        %v2141 = vpop.f32.mrb[0].mxu0
        %v2142 = vadd.f32 0.0, %v2141
        %2143 = vmatprep.mubr.bf16.mxu0 %v1690
        %2144 = vmatmul.mubr.bf16.gmra.mrb[0].mxu0 %v1689
        %v2145 = vpop.f32.mrb[0].mxu0
        %v2146 = vadd.f32 0.0, %v2145
        %v2147 = vpop.f32.mrb[0].mxu0
        %v2148 = vadd.f32 0.0, %v2147
        %v2149 = vpop.f32.mrb[0].mxu0
        %v2150 = vadd.f32 0.0, %v2149
        %v2151 = vpop.f32.mrb[0].mxu0
        %v2152 = vadd.f32 0.0, %v2151
        %2153 = vmatprep.mubr.bf16.mxu0 %v1694
        %2154 = vmatmul.mubr.bf16.gmra.mrb[0].mxu0 %v1693
        %v2155 = vpop.f32.mrb[0].mxu0
        %v2156 = vadd.f32 0.0, %v2155
        %v2157 = vpop.f32.mrb[0].mxu0
        %v2158 = vadd.f32 0.0, %v2157
        %v2159 = vpop.f32.mrb[0].mxu0
        %v2160 = vadd.f32 0.0, %v2159
        %v2161 = vpop.f32.mrb[0].mxu0
        %v2162 = vadd.f32 0.0, %v2161
        %2163 = vmatprep.mubr.bf16.mxu0 %v1698
        %2164 = vmatmul.mubr.bf16.gmra.mrb[0].mxu0 %v1697
        %v2165 = vpop.f32.mrb[0].mxu0
        %v2166 = vadd.f32 0.0, %v2165
        %v2167 = vpop.f32.mrb[0].mxu0
        %v2168 = vadd.f32 0.0, %v2167
        %v2169 = vpop.f32.mrb[0].mxu0
        %v2170 = vadd.f32 0.0, %v2169
        %v2171 = vpop.f32.mrb[0].mxu0
        %v2172 = vadd.f32 0.0, %v2171
        %2173 = vmatprep.mubr.bf16.mxu0 %v1702
        %2174 = vmatmul.mubr.bf16.gmra.mrb[0].mxu0 %v1701
        %v2175 = vpop.f32.mrb[0].mxu0
        %v2176 = vadd.f32 0.0, %v2175
        %v2177 = vpop.f32.mrb[0].mxu0
        %v2178 = vadd.f32 0.0, %v2177
        %v2179 = vpop.f32.mrb[0].mxu0
        %v2180 = vadd.f32 0.0, %v2179
        %v2181 = vpop.f32.mrb[0].mxu0
        %v2182 = vadd.f32 0.0, %v2181
        %2183 = vmatprep.mubr.bf16.mxu0 %v1706
        %2184 = vmatmul.mubr.bf16.gmra.mrb[0].mxu0 %v1705
        %v2185 = vpop.f32.mrb[0].mxu0
        %v2186 = vadd.f32 0.0, %v2185
        %v2187 = vpop.f32.mrb[0].mxu0
        %v2188 = vadd.f32 0.0, %v2187
        %v2189 = vpop.f32.mrb[0].mxu0
        %v2190 = vadd.f32 0.0, %v2189
        %v2191 = vpop.f32.mrb[0].mxu0
        %v2192 = vadd.f32 0.0, %v2191
        %2193 = vmatprep.mubr.bf16.mxu0 %v1710
        %2194 = vmatmul.mubr.bf16.gmra.mrb[0].mxu0 %v1709
        %v2195 = vpop.f32.mrb[0].mxu0
        %v2196 = vadd.f32 0.0, %v2195
        %v2197 = vpop.f32.mrb[0].mxu0
        %v2198 = vadd.f32 0.0, %v2197
        %v2199 = vpop.f32.mrb[0].mxu0
        %v2200 = vadd.f32 0.0, %v2199
        %v2201 = vpop.f32.mrb[0].mxu0
        %v2202 = vadd.f32 0.0, %v2201
        %2203 = vmatprep.mubr.bf16.mxu0 %v1714
        %2204 = vmatmul.mubr.bf16.gmra.mrb[0].mxu0 %v1713
        %v2205 = vpop.f32.mrb[0].mxu0
        %v2206 = vadd.f32 0.0, %v2205
        %v2207 = vpop.f32.mrb[0].mxu0
        %v2208 = vadd.f32 0.0, %v2207
        %v2209 = vpop.f32.mrb[0].mxu0
        %v2210 = vadd.f32 0.0, %v2209
        %v2211 = vpop.f32.mrb[0].mxu0
        %v2212 = vadd.f32 0.0, %v2211
        %2213 = vdwg.mxu0
        %2214 = vmatprep.subr.bf16.mxu0 %v2006
        %2215 = vmatpush1.bf16.msra.mxu0 %v2005
        %2216 = vmatprep.subr.bf16.mxu0 %v2008
        %2217 = vmatpush1.bf16.msra.mxu0 %v2007
        %2218 = vmatprep.subr.bf16.mxu0 %v2010
        %2219 = vmatpush1.bf16.msra.mxu0 %v2009
        %2220 = vmatprep.subr.bf16.mxu0 %v2012
        %2221 = vmatpush1.bf16.msra.mxu0 %v2011
        %2222 = vmatprep.subr.bf16.mxu0 %v2014
        %2223 = vmatpush1.bf16.msra.mxu0 %v2013
        %2224 = vmatprep.subr.bf16.mxu0 %v2016
        %2225 = vmatpush1.bf16.msra.mxu0 %v2015
        %2226 = vmatprep.subr.bf16.mxu0 %v2018
        %2227 = vmatpush1.bf16.msra.mxu0 %v2017
        %2228 = vmatprep.subr.bf16.mxu0 %v2020
        %2229 = vmatpush1.bf16.msra.mxu0 %v2019
        %2230 = vmatprep.subr.bf16.mxu0 %v2022
        %2231 = vmatpush1.bf16.msra.mxu0 %v2021
        %2232 = vmatprep.subr.bf16.mxu0 %v2024
        %2233 = vmatpush1.bf16.msra.mxu0 %v2023
        %2234 = vmatprep.subr.bf16.mxu0 %v2026
        %2235 = vmatpush1.bf16.msra.mxu0 %v2025
        %2236 = vmatprep.subr.bf16.mxu0 %v2028
        %2237 = vmatpush1.bf16.msra.mxu0 %v2027
        %2238 = vmatprep.subr.bf16.mxu0 %v2030
        %2239 = vmatpush1.bf16.msra.mxu0 %v2029
        %2240 = vmatprep.subr.bf16.mxu0 %v2032
        %2241 = vmatpush1.bf16.msra.mxu0 %v2031
        %2242 = vmatprep.subr.bf16.mxu0 %v2034
        %2243 = vmatpush1.bf16.msra.mxu0 %v2033
        %2244 = vmatprep.subr.bf16.mxu0 %v2036
        %2245 = vmatpush1.bf16.msra.mxu0 %v2035
        %2246 = vmatprep.mubr.bf16.mxu0 %v1688
        %2247 = vmatmul.mubr.bf16.gmra.mrb[0].mxu0 %v1687
        %v2248 = vpop.f32.mrb[0].mxu0
        %v2249 = vadd.f32 %v2136, %v2248
        %v2250 = vpop.f32.mrb[0].mxu0
        %v2251 = vadd.f32 %v2138, %v2250
        %v2252 = vpop.f32.mrb[0].mxu0
        %v2253 = vadd.f32 %v2140, %v2252
        %v2254 = vpop.f32.mrb[0].mxu0
        %v2255 = vadd.f32 %v2142, %v2254
        %2256 = vmatprep.mubr.bf16.mxu0 %v1692
        %2257 = vmatmul.mubr.bf16.gmra.mrb[0].mxu0 %v1691
        %v2258 = vpop.f32.mrb[0].mxu0
        %v2259 = vadd.f32 %v2146, %v2258
        %v2260 = vpop.f32.mrb[0].mxu0
        %v2261 = vadd.f32 %v2148, %v2260
        %v2262 = vpop.f32.mrb[0].mxu0
        %v2263 = vadd.f32 %v2150, %v2262
        %v2264 = vpop.f32.mrb[0].mxu0
        %v2265 = vadd.f32 %v2152, %v2264
        %2266 = vmatprep.mubr.bf16.mxu0 %v1696
        %2267 = vmatmul.mubr.bf16.gmra.mrb[0].mxu0 %v1695
        %v2268 = vpop.f32.mrb[0].mxu0
        %v2269 = vadd.f32 %v2156, %v2268
        %v2270 = vpop.f32.mrb[0].mxu0
        %v2271 = vadd.f32 %v2158, %v2270
        %v2272 = vpop.f32.mrb[0].mxu0
        %v2273 = vadd.f32 %v2160, %v2272
        %v2274 = vpop.f32.mrb[0].mxu0
        %v2275 = vadd.f32 %v2162, %v2274
        %2276 = vmatprep.mubr.bf16.mxu0 %v1700
        %2277 = vmatmul.mubr.bf16.gmra.mrb[0].mxu0 %v1699
        %v2278 = vpop.f32.mrb[0].mxu0
        %v2279 = vadd.f32 %v2166, %v2278
        %v2280 = vpop.f32.mrb[0].mxu0
        %v2281 = vadd.f32 %v2168, %v2280
        %v2282 = vpop.f32.mrb[0].mxu0
        %v2283 = vadd.f32 %v2170, %v2282
        %v2284 = vpop.f32.mrb[0].mxu0
        %v2285 = vadd.f32 %v2172, %v2284
        %2286 = vmatprep.mubr.bf16.mxu0 %v1704
        %2287 = vmatmul.mubr.bf16.gmra.mrb[0].mxu0 %v1703
        %v2288 = vpop.f32.mrb[0].mxu0
        %v2289 = vadd.f32 %v2176, %v2288
        %v2290 = vpop.f32.mrb[0].mxu0
        %v2291 = vadd.f32 %v2178, %v2290
        %v2292 = vpop.f32.mrb[0].mxu0
        %v2293 = vadd.f32 %v2180, %v2292
        %v2294 = vpop.f32.mrb[0].mxu0
        %v2295 = vadd.f32 %v2182, %v2294
        %2296 = vmatprep.mubr.bf16.mxu0 %v1708
        %2297 = vmatmul.mubr.bf16.gmra.mrb[0].mxu0 %v1707
        %v2298 = vpop.f32.mrb[0].mxu0
        %v2299 = vadd.f32 %v2186, %v2298
        %v2300 = vpop.f32.mrb[0].mxu0
        %v2301 = vadd.f32 %v2188, %v2300
        %v2302 = vpop.f32.mrb[0].mxu0
        %v2303 = vadd.f32 %v2190, %v2302
        %v2304 = vpop.f32.mrb[0].mxu0
        %v2305 = vadd.f32 %v2192, %v2304
        %2306 = vmatprep.mubr.bf16.mxu0 %v1712
        %2307 = vmatmul.mubr.bf16.gmra.mrb[0].mxu0 %v1711
        %v2308 = vpop.f32.mrb[0].mxu0
        %v2309 = vadd.f32 %v2196, %v2308
        %v2310 = vpop.f32.mrb[0].mxu0
        %v2311 = vadd.f32 %v2198, %v2310
        %v2312 = vpop.f32.mrb[0].mxu0
        %v2313 = vadd.f32 %v2200, %v2312
        %v2314 = vpop.f32.mrb[0].mxu0
        %v2315 = vadd.f32 %v2202, %v2314
        %2316 = vmatprep.mubr.bf16.mxu0 %v1716
        %2317 = vmatmul.mubr.bf16.gmra.mrb[0].mxu0 %v1715
        %v2318 = vpop.f32.mrb[0].mxu0
        %v2319 = vadd.f32 %v2206, %v2318
        %v2320 = vpop.f32.mrb[0].mxu0
        %v2321 = vadd.f32 %v2208, %v2320
        %v2322 = vpop.f32.mrb[0].mxu0
        %v2323 = vadd.f32 %v2210, %v2322
        %v2324 = vpop.f32.mrb[0].mxu0
        %v2325 = vadd.f32 %v2212, %v2324
        %2326 = vdwg.mxu0
        %v2327 = vadd.f32 %v1653, %v2249
        %v2328 = vadd.f32 %v1654, %v2251
        %v2329 = vadd.f32 %v1655, %v2253
        %v2330 = vadd.f32 %v1656, %v2255
        %v2331 = vadd.f32 %v1657, %v2259
        %v2332 = vadd.f32 %v1658, %v2261
        %v2333 = vadd.f32 %v1659, %v2263
        %v2334 = vadd.f32 %v1660, %v2265
        %v2335 = vadd.f32 %v1661, %v2269
        %v2336 = vadd.f32 %v1662, %v2271
        %v2337 = vadd.f32 %v1663, %v2273
        %v2338 = vadd.f32 %v1664, %v2275
        %v2339 = vadd.f32 %v1665, %v2279
        %v2340 = vadd.f32 %v1666, %v2281
        %v2341 = vadd.f32 %v1667, %v2283
        %v2342 = vadd.f32 %v1668, %v2285
        %v2343 = vadd.f32 %v1669, %v2289
        %v2344 = vadd.f32 %v1670, %v2291
        %v2345 = vadd.f32 %v1671, %v2293
        %v2346 = vadd.f32 %v1672, %v2295
        %v2347 = vadd.f32 %v1673, %v2299
        %v2348 = vadd.f32 %v1674, %v2301
        %v2349 = vadd.f32 %v1675, %v2303
        %v2350 = vadd.f32 %v1676, %v2305
        %v2351 = vadd.f32 %v1677, %v2309
        %v2352 = vadd.f32 %v1678, %v2311
        %v2353 = vadd.f32 %v1679, %v2313
        %v2354 = vadd.f32 %v1680, %v2315
        %v2355 = vadd.f32 %v1681, %v2319
        %v2356 = vadd.f32 %v1682, %v2321
        %v2357 = vadd.f32 %v1683, %v2323
        %v2358 = vadd.f32 %v1684, %v2325
        %2359 = vst [vmem:[#allocation2] sm:$0xff] %v2327
        %2360 = vst [vmem:[#allocation2 + $0x8] sm:$0xff] %v2328
        %2361 = vst [vmem:[#allocation2 + $0x10] sm:$0xff] %v2329
        %2362 = vst [vmem:[#allocation2 + $0x18] sm:$0xff] %v2330
        %2363 = vst [vmem:[#allocation2 + $0x20] sm:$0xff] %v2331
        %2364 = vst [vmem:[#allocation2 + $0x28] sm:$0xff] %v2332
        %2365 = vst [vmem:[#allocation2 + $0x30] sm:$0xff] %v2333
        %2366 = vst [vmem:[#allocation2 + $0x38] sm:$0xff] %v2334
        %2367 = vst [vmem:[#allocation2 + $0x40] sm:$0xff] %v2335
        %2368 = vst [vmem:[#allocation2 + $0x48] sm:$0xff] %v2336
        %2369 = vst [vmem:[#allocation2 + $0x50] sm:$0xff] %v2337
        %2370 = vst [vmem:[#allocation2 + $0x58] sm:$0xff] %v2338
        %2371 = vst [vmem:[#allocation2 + $0x60] sm:$0xff] %v2339
        %2372 = vst [vmem:[#allocation2 + $0x68] sm:$0xff] %v2340
        %2373 = vst [vmem:[#allocation2 + $0x70] sm:$0xff] %v2341
        %2374 = vst [vmem:[#allocation2 + $0x78] sm:$0xff] %v2342
        %2375 = vst [vmem:[#allocation2 + $0x80] sm:$0xff] %v2343
        %2376 = vst [vmem:[#allocation2 + $0x88] sm:$0xff] %v2344
        %2377 = vst [vmem:[#allocation2 + $0x90] sm:$0xff] %v2345
        %2378 = vst [vmem:[#allocation2 + $0x98] sm:$0xff] %v2346
        %2379 = vst [vmem:[#allocation2 + $0xa0] sm:$0xff] %v2347
        %2380 = vst [vmem:[#allocation2 + $0xa8] sm:$0xff] %v2348
        %2381 = vst [vmem:[#allocation2 + $0xb0] sm:$0xff] %v2349
        %2382 = vst [vmem:[#allocation2 + $0xb8] sm:$0xff] %v2350
        %2383 = vst [vmem:[#allocation2 + $0xc0] sm:$0xff] %v2351
        %2384 = vst [vmem:[#allocation2 + $0xc8] sm:$0xff] %v2352
        %2385 = vst [vmem:[#allocation2 + $0xd0] sm:$0xff] %v2353
        %2386 = vst [vmem:[#allocation2 + $0xd8] sm:$0xff] %v2354
        %2387 = vst [vmem:[#allocation2 + $0xe0] sm:$0xff] %v2355
        %2388 = vst [vmem:[#allocation2 + $0xe8] sm:$0xff] %v2356
        %2389 = vst [vmem:[#allocation2 + $0xf0] sm:$0xff] %v2357
        %2390 = vst [vmem:[#allocation2 + $0xf8] sm:$0xff] %v2358
        %p2391 = scmp.eq.s32.totalorder %s33, 1
        // Predicated region
        $region61: #{tpu_custom_call.1} parent=39 // pred_check
          %p2392 = pneg %p2391
        $region62: #{tpu_custom_call.1} parent=39 // pred_check_branch
          %2394 = sbr.rel (%p2392) target = $region64
        $region63: #{tpu_custom_call.1} parent=39 // pred_region
          %v2395 = vld [vmem:[#allocation2] sm:$0xff]
          %v2396 = vld [vmem:[#allocation2 + $0x8] sm:$0xff]
          %v2397 = vld [vmem:[#allocation2 + $0x10] sm:$0xff]
          %v2398 = vld [vmem:[#allocation2 + $0x18] sm:$0xff]
          %v2399 = vld [vmem:[#allocation2 + $0x20] sm:$0xff]
          %v2400 = vld [vmem:[#allocation2 + $0x28] sm:$0xff]
          %v2401 = vld [vmem:[#allocation2 + $0x30] sm:$0xff]
          %v2402 = vld [vmem:[#allocation2 + $0x38] sm:$0xff]
          %v2403 = vld [vmem:[#allocation2 + $0x40] sm:$0xff]
          %v2404 = vld [vmem:[#allocation2 + $0x48] sm:$0xff]
          %v2405 = vld [vmem:[#allocation2 + $0x50] sm:$0xff]
          %v2406 = vld [vmem:[#allocation2 + $0x58] sm:$0xff]
          %v2407 = vld [vmem:[#allocation2 + $0x60] sm:$0xff]
          %v2408 = vld [vmem:[#allocation2 + $0x68] sm:$0xff]
          %v2409 = vld [vmem:[#allocation2 + $0x70] sm:$0xff]
          %v2410 = vld [vmem:[#allocation2 + $0x78] sm:$0xff]
          %v2411 = vld [vmem:[#allocation2 + $0x80] sm:$0xff]
          %v2412 = vld [vmem:[#allocation2 + $0x88] sm:$0xff]
          %v2413 = vld [vmem:[#allocation2 + $0x90] sm:$0xff]
          %v2414 = vld [vmem:[#allocation2 + $0x98] sm:$0xff]
          %v2415 = vld [vmem:[#allocation2 + $0xa0] sm:$0xff]
          %v2416 = vld [vmem:[#allocation2 + $0xa8] sm:$0xff]
          %v2417 = vld [vmem:[#allocation2 + $0xb0] sm:$0xff]
          %v2418 = vld [vmem:[#allocation2 + $0xb8] sm:$0xff]
          %v2419 = vld [vmem:[#allocation2 + $0xc0] sm:$0xff]
          %v2420 = vld [vmem:[#allocation2 + $0xc8] sm:$0xff]
          %v2421 = vld [vmem:[#allocation2 + $0xd0] sm:$0xff]
          %v2422 = vld [vmem:[#allocation2 + $0xd8] sm:$0xff]
          %v2423 = vld [vmem:[#allocation2 + $0xe0] sm:$0xff]
          %v2424 = vld [vmem:[#allocation2 + $0xe8] sm:$0xff]
          %v2425 = vld [vmem:[#allocation2 + $0xf0] sm:$0xff]
          %v2426 = vld [vmem:[#allocation2 + $0xf8] sm:$0xff]
          %v2427 = vld [vmem:[%s4] sm:$0x3]
          %v2429 = vlaneseq
          %v2430 = vshrl.u32 %v2429, 7
          %v2431 = vsub.s32 0, %v2430
          %v2432 = vrot.slane %v2427, %v2431
          %v2433 = vlaneseq
          %v2434 = vshrl.u32 %v2433, 7
          %v2435 = vsub.s32 1, %v2434
          %v2436 = vrot.slane %v2427, %v2435
          %v2439 = vadd.f32 %v2395, %v2432
          %v2440 = vadd.f32 %v2396, %v2436
          %v2441 = vadd.f32 %v2397, %v2432
          %v2442 = vadd.f32 %v2398, %v2436
          %v2443 = vadd.f32 %v2399, %v2432
          %v2444 = vadd.f32 %v2400, %v2436
          %v2445 = vadd.f32 %v2401, %v2432
          %v2446 = vadd.f32 %v2402, %v2436
          %v2447 = vadd.f32 %v2403, %v2432
          %v2448 = vadd.f32 %v2404, %v2436
          %v2449 = vadd.f32 %v2405, %v2432
          %v2450 = vadd.f32 %v2406, %v2436
          %v2451 = vadd.f32 %v2407, %v2432
          %v2452 = vadd.f32 %v2408, %v2436
          %v2453 = vadd.f32 %v2409, %v2432
          %v2454 = vadd.f32 %v2410, %v2436
          %v2455 = vadd.f32 %v2411, %v2432
          %v2456 = vadd.f32 %v2412, %v2436
          %v2457 = vadd.f32 %v2413, %v2432
          %v2458 = vadd.f32 %v2414, %v2436
          %v2459 = vadd.f32 %v2415, %v2432
          %v2460 = vadd.f32 %v2416, %v2436
          %v2461 = vadd.f32 %v2417, %v2432
          %v2462 = vadd.f32 %v2418, %v2436
          %v2463 = vadd.f32 %v2419, %v2432
          %v2464 = vadd.f32 %v2420, %v2436
          %v2465 = vadd.f32 %v2421, %v2432
          %v2466 = vadd.f32 %v2422, %v2436
          %v2467 = vadd.f32 %v2423, %v2432
          %v2468 = vadd.f32 %v2424, %v2436
          %v2469 = vadd.f32 %v2425, %v2432
          %v2470 = vadd.f32 %v2426, %v2436
          %2471 = vst [vmem:[%s371] sm:$0xff] %v2439
          %2472 = vst [vmem:[%s371 + $0x8] sm:$0xff] %v2440
          %2473 = vst [vmem:[%s371 + $0x10] sm:$0xff] %v2441
          %2474 = vst [vmem:[%s371 + $0x18] sm:$0xff] %v2442
          %2475 = vst [vmem:[%s371 + $0x20] sm:$0xff] %v2443
          %2476 = vst [vmem:[%s371 + $0x28] sm:$0xff] %v2444
          %2477 = vst [vmem:[%s371 + $0x30] sm:$0xff] %v2445
          %2478 = vst [vmem:[%s371 + $0x38] sm:$0xff] %v2446
          %2479 = vst [vmem:[%s371 + $0x40] sm:$0xff] %v2447
          %2480 = vst [vmem:[%s371 + $0x48] sm:$0xff] %v2448
          %2481 = vst [vmem:[%s371 + $0x50] sm:$0xff] %v2449
          %2482 = vst [vmem:[%s371 + $0x58] sm:$0xff] %v2450
          %2483 = vst [vmem:[%s371 + $0x60] sm:$0xff] %v2451
          %2484 = vst [vmem:[%s371 + $0x68] sm:$0xff] %v2452
          %2485 = vst [vmem:[%s371 + $0x70] sm:$0xff] %v2453
          %2486 = vst [vmem:[%s371 + $0x78] sm:$0xff] %v2454
          %2487 = vst [vmem:[%s371 + $0x80] sm:$0xff] %v2455
          %2488 = vst [vmem:[%s371 + $0x88] sm:$0xff] %v2456
          %2489 = vst [vmem:[%s371 + $0x90] sm:$0xff] %v2457
          %2490 = vst [vmem:[%s371 + $0x98] sm:$0xff] %v2458
          %2491 = vst [vmem:[%s371 + $0xa0] sm:$0xff] %v2459
          %2492 = vst [vmem:[%s371 + $0xa8] sm:$0xff] %v2460
          %2493 = vst [vmem:[%s371 + $0xb0] sm:$0xff] %v2461
          %2494 = vst [vmem:[%s371 + $0xb8] sm:$0xff] %v2462
          %2495 = vst [vmem:[%s371 + $0xc0] sm:$0xff] %v2463
          %2496 = vst [vmem:[%s371 + $0xc8] sm:$0xff] %v2464
          %2497 = vst [vmem:[%s371 + $0xd0] sm:$0xff] %v2465
          %2498 = vst [vmem:[%s371 + $0xd8] sm:$0xff] %v2466
          %2499 = vst [vmem:[%s371 + $0xe0] sm:$0xff] %v2467
          %2500 = vst [vmem:[%s371 + $0xe8] sm:$0xff] %v2468
          %2501 = vst [vmem:[%s371 + $0xf0] sm:$0xff] %v2469
          %2502 = vst [vmem:[%s371 + $0xf8] sm:$0xff] %v2470
        $region64: #{tpu_custom_call.1} parent=39 // pred_fallthru
          _
        %s2503 = sand.u32 %s173, 1
        %s2504 = scalar_lea.sflag [#allocation5], %s2503
        %s2505 = sand.u32 %s173, 1
        %s2506 = smul.addr %s2505, 256
        %s2507 = scalar_lea.vmem [#allocation11], %s2506
        // Predicated region
        $region65: #{tpu_custom_call.1} parent=39 // pred_check
          %p2508 = pneg %p183
        $region66: #{tpu_custom_call.1} parent=39 // pred_check_branch
          %2510 = sbr.rel (%p2508) target = $region68
        $region67: #{tpu_custom_call.1} parent=39 // pred_region
          %s2511 = smul.u32 16, %s32
          %s2513 = ssub.s32 4096, 4096
          %2514 = vsyncadd %s2504, %s2513
          %s2515 = smul.addr %s2511, 2
          %s2516 = smul.addr %s2515, 128
          %s2517 = scalar_lea.hbm %s5, %s2516
          %s2518 = sshll.u32 %s2507, 4
          %s2519 = int_to_ptr.vmem [resolvable:$true] %s2518
          %2524 = dma.vmem_to_hbm [thread:$0]  %s2519, 4096, %s2517, %s2504, 256, 256, 16
        $region68: #{tpu_custom_call.1} parent=39 // pred_fallthru
          _
      $region40: #{tpu_custom_call.1} parent=5 // pred_fallthru
        _
      %p2525 = scmp.le.s32.totalorder 2, %s23
      // Predicated region
      $region69: #{tpu_custom_call.1} parent=5 // pred_check
        %p2526 = pneg %p2525
      $region70: #{tpu_custom_call.1} parent=5 // pred_check_branch
        %2528 = sbr.rel (%p2526) target = $region72
      $region71: #{tpu_custom_call.1} parent=5 // pred_region
        %s2529 = ssub.s32 %s23, 2
        // Predicated region
        $region73: #{tpu_custom_call.1} parent=71 // pred_check
          %p2530 = pneg %p189
        $region74: #{tpu_custom_call.1} parent=71 // pred_check_branch
          %2532 = sbr.rel (%p2530) target = $region76
        $region75: #{tpu_custom_call.1} parent=71 // pred_region
          %s2533 = sand.u32 %s174, 1
          %s2534 = scalar_lea.sflag [#allocation5], %s2533
          %s2535 = sand.u32 %s174, 1
          %s2536 = smul.addr %s2535, 256
          %s2537 = scalar_lea.vmem [#allocation11], %s2536
          %2538 = dma.done %s2534, 4096
        $region76: #{tpu_custom_call.1} parent=71 // pred_fallthru
          _
      $region72: #{tpu_custom_call.1} parent=5 // pred_fallthru
        _
    $region6: #{tpu_custom_call.1} parent=1 // loop_footer
      %s27 = sadd.s32 1, %s23
    $region7: #{tpu_custom_call.1} parent=1 // loop_footer_branch
      %22 = sbr.rel target = $region3
    $region8: #{tpu_custom_call.1} parent=1 // loop_exit
      _
    %2539 = vsyncpa [#allocation4], 1
    %s2540 = scalar_lea.sflag [#allocation4], 1
    %2541 = vsyncpa %s2540, 1
    %2542 = vsyncpa [#allocation7], 1
    %s2543 = scalar_lea.sflag [#allocation7], 1
    %2544 = vsyncpa %s2543, 1
    %2545 = vsyncpa [#allocation10], 1
    %s2546 = scalar_lea.sflag [#allocation10], 1
    %2547 = vsyncpa %s2546, 1
    %2548 = vsyncpa [#allocation5], 1
    %s2549 = scalar_lea.sflag [#allocation5], 1
    %2550 = vsyncpa %s2549, 1

</llo_original>
